<compile_context>
chip_gen: v7x
topology: tpu7x:2x2x1
jax: 0.10.0
libtpu: 0.0.40
codegen_flags: <defaults>
</compile_context>

<pallas_src>
import functools

import jax
import jax.numpy as jnp
import numpy as np
from jax.experimental import pallas as pl
from jax.experimental.pallas import tpu as pltpu


def _vmem():
    # Whole array resident in VMEM (all operands here are tiny).
    return pl.BlockSpec(memory_space=pltpu.MemorySpace.VMEM)


def _fused_unet_decoder_kernel(xp_ref, encp_ref, mask_ref,
                               wup_ref, bup_ref,
                               w1_ref, g1_ref, b1_ref,
                               w2_ref, g2_ref, b2_ref,
                               o_ref, cat_ref, h1_ref,
                               *, Wp, off, inv_count):
    Cin = cat_ref.shape[1]
    Cout = o_ref.shape[1]
    NL1 = o_ref.shape[2]                      # N*(H+2)*(W+2) flat padded pixels (lanes)
    G = cat_ref.shape[2]                      # NL1 + 2*off (global end-halos)
    eps = 1e-5

    # Hoisted loads (broadcast once, not per parity/tap).
    mask = mask_ref[...]                      # (1, NL1) f32, 1 at valid interior pixels
    bup = bup_ref[...]                        # (4*Cout, 1) f32
    g1, b1 = g1_ref[...], b1_ref[...]         # (Cout, 1) f32
    g2, b2 = g2_ref[...], b2_ref[...]

    # Zero ONLY the global end-halos; the [off, off+NL1) window is fully overwritten.
    cat_ref[:, :, 0:off] = jnp.zeros((4, Cin, off), cat_ref.dtype)
    cat_ref[:, :, off + NL1:G] = jnp.zeros((4, Cin, G - NL1 - off), cat_ref.dtype)
    h1_ref[:, :, 0:off] = jnp.zeros((4, Cout, off), h1_ref.dtype)
    h1_ref[:, :, off + NL1:G] = jnp.zeros((4, Cout, G - NL1 - off), h1_ref.dtype)

    # ---- Stage 1: ConvTranspose2d(k=2, s=2) as ONE bf16 dot, lane-dense result. -------
    # Row order of wup/bup/y is blk*Cout + o with blk = ki*2 + kj (output pixel parity).
    y = jnp.dot(wup_ref[...], xp_ref[...],
                preferred_element_type=jnp.float32) + bup        # (4*Cout, NL1) f32
    y = y * mask              # keep the bias out of the conv zero-padding positions
    cat_ref[:, 0:Cout, off:off + NL1] = (
        y.reshape(4, Cout, NL1).astype(cat_ref.dtype))
    # torch.cat([up, enc], dim=1): channels [0,Cout) = up, [Cout,Cin) = enc.
    cat_ref[:, Cout:Cin, off:off + NL1] = encp_ref[...]

    def tap(blk, t):
        # 3x3 tap (dy,dx) for output parity blk -> (source parity, lane-slice start).
        pa, pb = divmod(blk, 2)
        dy, dx = divmod(t, 3)
        da, pr = divmod(pa + dy - 1, 2)
        db, pc = divmod(pb + dx - 1, 2)
        return pr * 2 + pc, off + da * Wp + db

    def conv_bn_relu(src_ref, w_ref, g, b):
        # Conv2d(3x3, pad=1, no bias) + BatchNorm2d (batch stats, biased var, eps=1e-5)
        # + ReLU on flat padded parity planes.  One im2col dot per output parity
        # (K = 9*C); single-pass masked sum / sum-of-squares for BN (f32 accumulators).
        planes = [src_ref[sb] for sb in range(4)]        # 4x (C, G) bf16, loaded once
        w = w_ref[...]                                   # (Cout, 9*C) bf16
        zs = []
        s = 0.0
        q = 0.0
        for blk in range(4):
            rows = []
            for t in range(9):
                sb, st = tap(blk, t)
                rows.append(planes[sb][:, st:st + NL1])  # contiguous lane slice
            rhs = jnp.concatenate(rows, axis=0)          # (9*C, NL1) bf16
            z = jnp.dot(w, rhs, preferred_element_type=jnp.float32)   # (Cout, NL1) f32
            zm = z * mask
            s = s + jnp.sum(zm, axis=1, keepdims=True)
            q = q + jnp.sum(zm * z, axis=1, keepdims=True)
            zs.append(z)
        mean = s * inv_count
        var = q * inv_count - mean * mean   # TODO(synk): per-tile Welford once tiled
        scale = jax.lax.rsqrt(var + eps) * g
        shift = b - mean * scale
        return [jnp.maximum(z * scale + shift, 0.0) for z in zs]

    # ---- Stage 2: conv1 + BN1 + ReLU, masked and re-staged (bf16) for conv2. ----------
    h1s = conv_bn_relu(cat_ref, w1_ref, g1, b1)
    for blk in range(4):
        h1_ref[blk, :, off:off + NL1] = (h1s[blk] * mask).astype(h1_ref.dtype)

    # ---- Stage 3: conv2 + BN2 + ReLU -> lane-dense output (junk halo columns are
    # dropped by the wrapper's interior extraction). -------------------------------------
    outs = conv_bn_relu(h1_ref, w2_ref, g2, b2)
    for blk in range(4):
        o_ref[blk] = outs[blk]


# -----------------------------------------------------------------------------
# Wrapper: PyTorch-style NCHW in/out; boundary layout prep; one fused pallas_call.
# -----------------------------------------------------------------------------
def unet_decoder_block_forward(x_nchw, enc_nchw, params):
    x = x_nchw.astype(jnp.float32)
    enc = enc_nchw.astype(jnp.float32)
    N, Cin, H, W = x.shape
    Cout = params["up_b"].shape[0]
    Cenc = Cin - Cout
    Ho, Wo = 2 * H, 2 * W
    Hp, Wp = H + 2, W + 2
    L1 = Hp * Wp
    NL1 = N * L1
    off = Wp + 1                       # global end-halo so all 9 tap shifts are in-bounds
    G = NL1 + 2 * off
    M2 = 4 * N * H * W                 # number of valid output pixels (BN count)

    # Center-crop enc_feat if spatial dims mismatch (static shapes -> plain Python).
    He, We = enc.shape[2], enc.shape[3]
    if (He, We) != (Ho, Wo):
        dh, dw = He - Ho, We - Wo
        enc = enc[:, :, dh // 2:He - dh + dh // 2, dw // 2:We - dw + dw // 2]

    # x -> channel-major, spatially zero-padded, flattened: (Cin, NL1) bf16.
    xp = jnp.transpose(x, (1, 0, 2, 3))
    xp = jnp.pad(xp, ((0, 0), (0, 0), (1, 1), (1, 1)))
    xp = xp.reshape(Cin, NL1).astype(jnp.bfloat16)

    # enc -> parity planes (space-to-depth), channel-major, padded, flattened:
    # (4, Cenc, NL1) bf16 with blk = pa*2 + pb.
    encp = enc.reshape(N, Cenc, H, 2, W, 2)
    encp = jnp.transpose(encp, (3, 5, 1, 0, 2, 4)).reshape(4, Cenc, N, H, W)
    encp = jnp.pad(encp, ((0, 0), (0, 0), (0, 0), (1, 1), (1, 1)))
    encp = encp.reshape(4, Cenc, NL1).astype(jnp.bfloat16)

    # Valid-pixel mask in the padded-flat geometry: (1, NL1) f32.
    mask = jnp.pad(jnp.ones((N, H, W), jnp.float32), ((0, 0), (1, 1), (1, 1)))
    mask = mask.reshape(1, NL1)

    # Weight prepacking (tiny, once per call).  bf16 operands, f32 accumulation.
    # ConvTranspose2d weight (Cin, Cout, 2, 2) -> (blk*Cout + o, Cin).
    wup = (jnp.transpose(params["up_w"], (2, 3, 1, 0))
              .reshape(4 * Cout, Cin).astype(jnp.bfloat16))
    bup = jnp.tile(params["up_b"].astype(jnp.float32), 4).reshape(4 * Cout, 1)
    # Conv2d weights (Cout, Cin, 3, 3) -> (Cout, tap*Cin + c), tap = dy*3 + dx.
    w1 = (jnp.transpose(params["conv1_w"], (0, 2, 3, 1))
             .reshape(Cout, 9 * Cin).astype(jnp.bfloat16))
    w2 = (jnp.transpose(params["conv2_w"], (0, 2, 3, 1))
             .reshape(Cout, 9 * Cout).astype(jnp.bfloat16))
    g1 = params["bn1_g"].reshape(Cout, 1).astype(jnp.float32)
    b1 = params["bn1_b"].reshape(Cout, 1).astype(jnp.float32)
    g2 = params["bn2_g"].reshape(Cout, 1).astype(jnp.float32)
    b2 = params["bn2_b"].reshape(Cout, 1).astype(jnp.float32)

    kernel = functools.partial(_fused_unet_decoder_kernel,
                               Wp=Wp, off=off, inv_count=1.0 / M2)

    out_pf = pl.pallas_call(
        kernel,
        out_shape=jax.ShapeDtypeStruct((4, Cout, NL1), jnp.float32),
        in_specs=[_vmem()] * 11,
        out_specs=_vmem(),
        scratch_shapes=[
            # flat padded parity planes of concat([up, enc])  (bf16 staging)
            pltpu.VMEM((4, Cin, G), jnp.bfloat16),
            # flat padded parity planes of the conv1 output   (bf16 staging)
            pltpu.VMEM((4, Cout, G), jnp.bfloat16),
        ],
    )(xp, encp, mask, wup, bup, w1, g1, b1, w2, g2, b2)

    # Interior extraction + depth-to-space + NCHW in one boundary transpose.
    out = out_pf.reshape(2, 2, Cout, N, Hp, Wp)[:, :, :, :, 1:H + 1, 1:W + 1]
    out = jnp.transpose(out, (3, 2, 4, 0, 5, 1)).reshape(N, Cout, Ho, Wo)
    return out


# -----------------------------------------------------------------------------
# Pure-JAX f32 reference for validation.
# -----------------------------------------------------------------------------
def reference_forward(x_nchw, enc_nchw, params):
    x = jnp.transpose(x_nchw, (0, 2, 3, 1)).astype(jnp.float32)
    enc = jnp.transpose(enc_nchw, (0, 2, 3, 1)).astype(jnp.float32)
    N, H, W, Cin = x.shape
    Cout = params["up_b"].shape[0]

    y6 = jnp.einsum("nhwi,iokl->nhkwlo", x, params["up_w"],
                    precision=jax.lax.Precision.HIGHEST)
    y = y6.reshape(N, 2 * H, 2 * W, Cout) + params["up_b"]
    cat = jnp.concatenate([y, enc], axis=-1)

    def conv_bn_relu_ref(h, w_torch, g, b):
        w_hwio = jnp.transpose(w_torch, (2, 3, 1, 0))
        z = jax.lax.conv_general_dilated(
            h, w_hwio, (1, 1), "SAME",
            dimension_numbers=("NHWC", "HWIO", "NHWC"),
            precision=jax.lax.Precision.HIGHEST)
        mean = jnp.mean(z, axis=(0, 1, 2), keepdims=True)
        var = jnp.mean((z - mean) ** 2, axis=(0, 1, 2), keepdims=True)
        zn = (z - mean) * jax.lax.rsqrt(var + 1e-5) * g + b
        return jnp.maximum(zn, 0.0)

    h1 = conv_bn_relu_ref(cat, params["conv1_w"], params["bn1_g"], params["bn1_b"])
    h2 = conv_bn_relu_ref(h1, params["conv2_w"], params["bn2_g"], params["bn2_b"])
    return jnp.transpose(h2, (0, 3, 1, 2))


if __name__ == "__main__":
    key = jax.random.PRNGKey(0)
    ks = jax.random.split(key, 10)

    # Shapes consistent with the module: in_channels=8, out_channels=4,
    # enc_feat has in_channels - out_channels = 4 channels at 2x spatial size.
    N, Cin, Cout = 2, 8, 4
    H = W = 8
    x = jax.random.normal(ks[0], (N, Cin, H, W), jnp.float32)
    enc_feat = jax.random.normal(ks[1], (N, Cin - Cout, 2 * H, 2 * W), jnp.float32)

    params = {
        "up_w": jax.random.normal(ks[2], (Cin, Cout, 2, 2), jnp.float32)
                * (2.0 / (Cout * 4)) ** 0.5,                  # ConvTranspose2d (Cin,Cout,2,2)
        "up_b": 0.1 * jax.random.normal(ks[3], (Cout,), jnp.float32),
        "conv1_w": jax.random.normal(ks[4], (Cout, Cin, 3, 3), jnp.float32)
                   * (2.0 / (Cin * 9)) ** 0.5,                # Conv2d (Cout,Cin,3,3)
        "bn1_g": 1.0 + 0.1 * jax.random.normal(ks[5], (Cout,), jnp.float32),
        "bn1_b": 0.1 * jax.random.normal(ks[6], (Cout,), jnp.float32),
        "conv2_w": jax.random.normal(ks[7], (Cout, Cout, 3, 3), jnp.float32)
                   * (2.0 / (Cout * 9)) ** 0.5,
        "bn2_g": 1.0 + 0.1 * jax.random.normal(ks[8], (Cout,), jnp.float32),
        "bn2_b": 0.1 * jax.random.normal(ks[9], (Cout,), jnp.float32),
    }

    # NOTE on measurement: at this toy shape the kernel is launch/DMA-overhead dominated
    # (~0.1 MFLOP of matmul work); judge the structural optimizations at production
    # feature-map sizes with xprof (min over runs), not with wall-clock here.
    fwd = jax.jit(unet_decoder_block_forward)
    out = jax.block_until_ready(fwd(x, enc_feat, params))
    ref = jax.block_until_ready(jax.jit(reference_forward)(x, enc_feat, params))

    assert out.shape == (N, Cout, 2 * H, 2 * W), out.shape
    # bf16 MXU operands (f32 accumulation) vs an f32-HIGHEST reference through two chained
    # convs + batch-stat BN -> allow bf16-level tolerance.
    np.testing.assert_allclose(np.asarray(out), np.asarray(ref), rtol=3e-2, atol=3e-2)
    print("KERNEL_OK")
</pallas_src>

<mosaic_0001>
module attributes {stable_mosaic.version = 11 : i64} {
  func.func @_fused_unet_decoder_kernel(%arg0: memref<8x200xbf16, #tpu.memory_space<vmem>>, %arg1: memref<4x4x200xbf16, #tpu.memory_space<vmem>>, %arg2: memref<1x200xf32, #tpu.memory_space<vmem>>, %arg3: memref<16x8xbf16, #tpu.memory_space<vmem>>, %arg4: memref<16x1xf32, #tpu.memory_space<vmem>>, %arg5: memref<4x72xbf16, #tpu.memory_space<vmem>>, %arg6: memref<4x1xf32, #tpu.memory_space<vmem>>, %arg7: memref<4x1xf32, #tpu.memory_space<vmem>>, %arg8: memref<4x36xbf16, #tpu.memory_space<vmem>>, %arg9: memref<4x1xf32, #tpu.memory_space<vmem>>, %arg10: memref<4x1xf32, #tpu.memory_space<vmem>>, %arg11: memref<4x4x200xf32, #tpu.memory_space<vmem>>, %arg12: memref<4x8x222xbf16, #tpu.memory_space<vmem>>, %arg13: memref<4x4x222xbf16, #tpu.memory_space<vmem>>) attributes {dimension_semantics = [], scalar_prefetch = 0 : i64, scratch_operands = 2 : i64, tpu.core_type = #tpu.core_type<tc>} {
    %c0 = arith.constant 0 : index
    %c0_0 = arith.constant 0 : index
    %0 = vector.load %arg2[%c0, %c0_0] : memref<1x200xf32, #tpu.memory_space<vmem>>, vector<1x200xf32>
    %c0_1 = arith.constant 0 : index
    %c0_2 = arith.constant 0 : index
    %1 = vector.load %arg4[%c0_1, %c0_2] : memref<16x1xf32, #tpu.memory_space<vmem>>, vector<16x1xf32>
    %c0_3 = arith.constant 0 : index
    %c0_4 = arith.constant 0 : index
    %2 = vector.load %arg6[%c0_3, %c0_4] : memref<4x1xf32, #tpu.memory_space<vmem>>, vector<4x1xf32>
    %c0_5 = arith.constant 0 : index
    %c0_6 = arith.constant 0 : index
    %3 = vector.load %arg7[%c0_5, %c0_6] : memref<4x1xf32, #tpu.memory_space<vmem>>, vector<4x1xf32>
    %c0_7 = arith.constant 0 : index
    %c0_8 = arith.constant 0 : index
    %4 = vector.load %arg9[%c0_7, %c0_8] : memref<4x1xf32, #tpu.memory_space<vmem>>, vector<4x1xf32>
    %c0_9 = arith.constant 0 : index
    %c0_10 = arith.constant 0 : index
    %5 = vector.load %arg10[%c0_9, %c0_10] : memref<4x1xf32, #tpu.memory_space<vmem>>, vector<4x1xf32>
    %cst = arith.constant 0.000000e+00 : bf16
    %6 = vector.broadcast %cst : bf16 to vector<4x8x11xbf16>
    %c0_11 = arith.constant 0 : index
    %c0_12 = arith.constant 0 : index
    %c0_13 = arith.constant 0 : index
    %7 = vector.load %arg12[%c0_11, %c0_12, %c0_13] : memref<4x8x222xbf16, #tpu.memory_space<vmem>>, vector<4x8x11xbf16>
    tpu.vector_store %arg12[%c0_11, %c0_12, %c0_13], %6 {strides = array<i32>} : memref<4x8x222xbf16, #tpu.memory_space<vmem>>, vector<4x8x11xbf16>,
    %cst_14 = arith.constant 0.000000e+00 : bf16
    %8 = vector.broadcast %cst_14 : bf16 to vector<4x8x11xbf16>
    %c0_15 = arith.constant 0 : index
    %c0_16 = arith.constant 0 : index
    %c211 = arith.constant 211 : index
    %9 = vector.load %arg12[%c0_15, %c0_16, %c211] : memref<4x8x222xbf16, #tpu.memory_space<vmem>>, vector<4x8x11xbf16>
    tpu.vector_store %arg12[%c0_15, %c0_16, %c211], %8 {strides = array<i32>} : memref<4x8x222xbf16, #tpu.memory_space<vmem>>, vector<4x8x11xbf16>,
    %cst_17 = arith.constant 0.000000e+00 : bf16
    %10 = vector.broadcast %cst_17 : bf16 to vector<4x4x11xbf16>
    %c0_18 = arith.constant 0 : index
    %c0_19 = arith.constant 0 : index
    %c0_20 = arith.constant 0 : index
    %11 = vector.load %arg13[%c0_18, %c0_19, %c0_20] : memref<4x4x222xbf16, #tpu.memory_space<vmem>>, vector<4x4x11xbf16>
    tpu.vector_store %arg13[%c0_18, %c0_19, %c0_20], %10 {strides = array<i32>} : memref<4x4x222xbf16, #tpu.memory_space<vmem>>, vector<4x4x11xbf16>,
    %cst_21 = arith.constant 0.000000e+00 : bf16
    %12 = vector.broadcast %cst_21 : bf16 to vector<4x4x11xbf16>
    %c0_22 = arith.constant 0 : index
    %c0_23 = arith.constant 0 : index
    %c211_24 = arith.constant 211 : index
    %13 = vector.load %arg13[%c0_22, %c0_23, %c211_24] : memref<4x4x222xbf16, #tpu.memory_space<vmem>>, vector<4x4x11xbf16>
    tpu.vector_store %arg13[%c0_22, %c0_23, %c211_24], %12 {strides = array<i32>} : memref<4x4x222xbf16, #tpu.memory_space<vmem>>, vector<4x4x11xbf16>,
    %c0_25 = arith.constant 0 : index
    %c0_26 = arith.constant 0 : index
    %14 = vector.load %arg3[%c0_25, %c0_26] : memref<16x8xbf16, #tpu.memory_space<vmem>>, vector<16x8xbf16>
    %c0_27 = arith.constant 0 : index
    %c0_28 = arith.constant 0 : index
    %15 = vector.load %arg0[%c0_27, %c0_28] : memref<8x200xbf16, #tpu.memory_space<vmem>>, vector<8x200xbf16>
    %cst_29 = arith.constant dense<0.000000e+00> : vector<16x200xf32>
    %16 = tpu.matmul %14, %15, %cst_29 {dimension_numbers = #tpu.dot_dimension_numbers<[1], [0], [0], [1], [0, 0, 1, 1], [], []>} : vector<16x8xbf16>, vector<8x200xbf16>, vector<16x200xf32> -> vector<16x200xf32>
    %17 = vector.broadcast %1 : vector<16x1xf32> to vector<16x200xf32>
    %18 = arith.addf %16, %17 : vector<16x200xf32>
    %19 = vector.broadcast %0 : vector<1x200xf32> to vector<16x200xf32>
    %20 = arith.mulf %18, %19 : vector<16x200xf32>
    %21 = vector.shape_cast %20 : vector<16x200xf32> to vector<4x4x200xf32>
    %22 = arith.truncf %21 : vector<4x4x200xf32> to vector<4x4x200xbf16>
    %c0_30 = arith.constant 0 : index
    %c0_31 = arith.constant 0 : index
    %c11 = arith.constant 11 : index
    %23 = vector.load %arg12[%c0_30, %c0_31, %c11] : memref<4x8x222xbf16, #tpu.memory_space<vmem>>, vector<4x4x200xbf16>
    tpu.vector_store %arg12[%c0_30, %c0_31, %c11], %22 {strides = array<i32>} : memref<4x8x222xbf16, #tpu.memory_space<vmem>>, vector<4x4x200xbf16>,
    %c0_32 = arith.constant 0 : index
    %c0_33 = arith.constant 0 : index
    %c0_34 = arith.constant 0 : index
    %24 = vector.load %arg1[%c0_32, %c0_33, %c0_34] : memref<4x4x200xbf16, #tpu.memory_space<vmem>>, vector<4x4x200xbf16>
    %c0_35 = arith.constant 0 : index
    %c4 = arith.constant 4 : index
    %c11_36 = arith.constant 11 : index
    %25 = vector.load %arg12[%c0_35, %c4, %c11_36] : memref<4x8x222xbf16, #tpu.memory_space<vmem>>, vector<4x4x200xbf16>
    tpu.vector_store %arg12[%c0_35, %c4, %c11_36], %24 {strides = array<i32>} : memref<4x8x222xbf16, #tpu.memory_space<vmem>>, vector<4x4x200xbf16>,
    %c0_37 = arith.constant 0 : index
    %c0_38 = arith.constant 0 : index
    %c0_39 = arith.constant 0 : index
    %26 = vector.load %arg12[%c0_37, %c0_38, %c0_39] : memref<4x8x222xbf16, #tpu.memory_space<vmem>>, vector<1x8x222xbf16>
    %27 = vector.shape_cast %26 : vector<1x8x222xbf16> to vector<8x222xbf16>
    %c1 = arith.constant 1 : index
    %c0_40 = arith.constant 0 : index
    %c0_41 = arith.constant 0 : index
    %28 = vector.load %arg12[%c1, %c0_40, %c0_41] : memref<4x8x222xbf16, #tpu.memory_space<vmem>>, vector<1x8x222xbf16>
    %29 = vector.shape_cast %28 : vector<1x8x222xbf16> to vector<8x222xbf16>
    %c2 = arith.constant 2 : index
    %c0_42 = arith.constant 0 : index
    %c0_43 = arith.constant 0 : index
    %30 = vector.load %arg12[%c2, %c0_42, %c0_43] : memref<4x8x222xbf16, #tpu.memory_space<vmem>>, vector<1x8x222xbf16>
    %31 = vector.shape_cast %30 : vector<1x8x222xbf16> to vector<8x222xbf16>
    %c3 = arith.constant 3 : index
    %c0_44 = arith.constant 0 : index
    %c0_45 = arith.constant 0 : index
    %32 = vector.load %arg12[%c3, %c0_44, %c0_45] : memref<4x8x222xbf16, #tpu.memory_space<vmem>>, vector<1x8x222xbf16>
    %33 = vector.shape_cast %32 : vector<1x8x222xbf16> to vector<8x222xbf16>
    %c0_46 = arith.constant 0 : index
    %c0_47 = arith.constant 0 : index
    %34 = vector.load %arg5[%c0_46, %c0_47] : memref<4x72xbf16, #tpu.memory_space<vmem>>, vector<4x72xbf16>
    %35 = vector.extract_strided_slice %33 {offsets = [0, 0], sizes = [8, 200], strides = [1, 1]} : vector<8x222xbf16> to vector<8x200xbf16>
    %36 = vector.extract_strided_slice %31 {offsets = [0, 1], sizes = [8, 200], strides = [1, 1]} : vector<8x222xbf16> to vector<8x200xbf16>
    %37 = vector.extract_strided_slice %33 {offsets = [0, 1], sizes = [8, 200], strides = [1, 1]} : vector<8x222xbf16> to vector<8x200xbf16>
    %38 = vector.extract_strided_slice %29 {offsets = [0, 10], sizes = [8, 200], strides = [1, 1]} : vector<8x222xbf16> to vector<8x200xbf16>
    %39 = vector.extract_strided_slice %27 {offsets = [0, 11], sizes = [8, 200], strides = [1, 1]} : vector<8x222xbf16> to vector<8x200xbf16>
    %40 = vector.extract_strided_slice %29 {offsets = [0, 11], sizes = [8, 200], strides = [1, 1]} : vector<8x222xbf16> to vector<8x200xbf16>
    %41 = vector.extract_strided_slice %33 {offsets = [0, 10], sizes = [8, 200], strides = [1, 1]} : vector<8x222xbf16> to vector<8x200xbf16>
    %42 = vector.extract_strided_slice %31 {offsets = [0, 11], sizes = [8, 200], strides = [1, 1]} : vector<8x222xbf16> to vector<8x200xbf16>
    %43 = vector.extract_strided_slice %33 {offsets = [0, 11], sizes = [8, 200], strides = [1, 1]} : vector<8x222xbf16> to vector<8x200xbf16>
    %44 = tpu.concatenate %35, %36, %37, %38, %39, %40, %41, %42, %43 in 0 : vector<8x200xbf16>, vector<8x200xbf16>, vector<8x200xbf16>, vector<8x200xbf16>, vector<8x200xbf16>, vector<8x200xbf16>, vector<8x200xbf16>, vector<8x200xbf16>, vector<8x200xbf16> -> vector<72x200xbf16>
    %cst_48 = arith.constant dense<0.000000e+00> : vector<4x200xf32>
    %45 = tpu.matmul %34, %44, %cst_48 {dimension_numbers = #tpu.dot_dimension_numbers<[1], [0], [0], [1], [0, 0, 1, 1], [], []>} : vector<4x72xbf16>, vector<72x200xbf16>, vector<4x200xf32> -> vector<4x200xf32>
    %46 = vector.broadcast %0 : vector<1x200xf32> to vector<4x200xf32>
    %47 = arith.mulf %45, %46 : vector<4x200xf32>
    %cst_49 = arith.constant dense<0.000000e+00> : vector<4xf32>
    %48 = vector.multi_reduction <add>, %47, %cst_49 [1] : vector<4x200xf32> to vector<4xf32>
    %49 = vector.shape_cast %48 : vector<4xf32> to vector<4x1xf32>
    %cst_50 = arith.constant 0.000000e+00 : f32
    %50 = vector.broadcast %cst_50 : f32 to vector<4x1xf32>
    %51 = arith.addf %50, %49 : vector<4x1xf32>
    %52 = arith.mulf %47, %45 : vector<4x200xf32>
    %cst_51 = arith.constant dense<0.000000e+00> : vector<4xf32>
    %53 = vector.multi_reduction <add>, %52, %cst_51 [1] : vector<4x200xf32> to vector<4xf32>
    %54 = vector.shape_cast %53 : vector<4xf32> to vector<4x1xf32>
    %cst_52 = arith.constant 0.000000e+00 : f32
    %55 = vector.broadcast %cst_52 : f32 to vector<4x1xf32>
    %56 = arith.addf %55, %54 : vector<4x1xf32>
    %57 = vector.extract_strided_slice %31 {offsets = [0, 1], sizes = [8, 200], strides = [1, 1]} : vector<8x222xbf16> to vector<8x200xbf16>
    %58 = vector.extract_strided_slice %33 {offsets = [0, 1], sizes = [8, 200], strides = [1, 1]} : vector<8x222xbf16> to vector<8x200xbf16>
    %59 = vector.extract_strided_slice %31 {offsets = [0, 2], sizes = [8, 200], strides = [1, 1]} : vector<8x222xbf16> to vector<8x200xbf16>
    %60 = vector.extract_strided_slice %27 {offsets = [0, 11], sizes = [8, 200], strides = [1, 1]} : vector<8x222xbf16> to vector<8x200xbf16>
    %61 = vector.extract_strided_slice %29 {offsets = [0, 11], sizes = [8, 200], strides = [1, 1]} : vector<8x222xbf16> to vector<8x200xbf16>
    %62 = vector.extract_strided_slice %27 {offsets = [0, 12], sizes = [8, 200], strides = [1, 1]} : vector<8x222xbf16> to vector<8x200xbf16>
    %63 = vector.extract_strided_slice %31 {offsets = [0, 11], sizes = [8, 200], strides = [1, 1]} : vector<8x222xbf16> to vector<8x200xbf16>
    %64 = vector.extract_strided_slice %33 {offsets = [0, 11], sizes = [8, 200], strides = [1, 1]} : vector<8x222xbf16> to vector<8x200xbf16>
    %65 = vector.extract_strided_slice %31 {offsets = [0, 12], sizes = [8, 200], strides = [1, 1]} : vector<8x222xbf16> to vector<8x200xbf16>
    %66 = tpu.concatenate %57, %58, %59, %60, %61, %62, %63, %64, %65 in 0 : vector<8x200xbf16>, vector<8x200xbf16>, vector<8x200xbf16>, vector<8x200xbf16>, vector<8x200xbf16>, vector<8x200xbf16>, vector<8x200xbf16>, vector<8x200xbf16>, vector<8x200xbf16> -> vector<72x200xbf16>
    %cst_53 = arith.constant dense<0.000000e+00> : vector<4x200xf32>
    %67 = tpu.matmul %34, %66, %cst_53 {dimension_numbers = #tpu.dot_dimension_numbers<[1], [0], [0], [1], [0, 0, 1, 1], [], []>} : vector<4x72xbf16>, vector<72x200xbf16>, vector<4x200xf32> -> vector<4x200xf32>
    %68 = vector.broadcast %0 : vector<1x200xf32> to vector<4x200xf32>
    %69 = arith.mulf %67, %68 : vector<4x200xf32>
    %cst_54 = arith.constant dense<0.000000e+00> : vector<4xf32>
    %70 = vector.multi_reduction <add>, %69, %cst_54 [1] : vector<4x200xf32> to vector<4xf32>
    %71 = vector.shape_cast %70 : vector<4xf32> to vector<4x1xf32>
    %72 = arith.addf %51, %71 : vector<4x1xf32>
    %73 = arith.mulf %69, %67 : vector<4x200xf32>
    %cst_55 = arith.constant dense<0.000000e+00> : vector<4xf32>
    %74 = vector.multi_reduction <add>, %73, %cst_55 [1] : vector<4x200xf32> to vector<4xf32>
    %75 = vector.shape_cast %74 : vector<4xf32> to vector<4x1xf32>
    %76 = arith.addf %56, %75 : vector<4x1xf32>
    %77 = vector.extract_strided_slice %29 {offsets = [0, 10], sizes = [8, 200], strides = [1, 1]} : vector<8x222xbf16> to vector<8x200xbf16>
    %78 = vector.extract_strided_slice %27 {offsets = [0, 11], sizes = [8, 200], strides = [1, 1]} : vector<8x222xbf16> to vector<8x200xbf16>
    %79 = vector.extract_strided_slice %29 {offsets = [0, 11], sizes = [8, 200], strides = [1, 1]} : vector<8x222xbf16> to vector<8x200xbf16>
    %80 = vector.extract_strided_slice %33 {offsets = [0, 10], sizes = [8, 200], strides = [1, 1]} : vector<8x222xbf16> to vector<8x200xbf16>
    %81 = vector.extract_strided_slice %31 {offsets = [0, 11], sizes = [8, 200], strides = [1, 1]} : vector<8x222xbf16> to vector<8x200xbf16>
    %82 = vector.extract_strided_slice %33 {offsets = [0, 11], sizes = [8, 200], strides = [1, 1]} : vector<8x222xbf16> to vector<8x200xbf16>
    %83 = vector.extract_strided_slice %29 {offsets = [0, 20], sizes = [8, 200], strides = [1, 1]} : vector<8x222xbf16> to vector<8x200xbf16>
    %84 = vector.extract_strided_slice %27 {offsets = [0, 21], sizes = [8, 200], strides = [1, 1]} : vector<8x222xbf16> to vector<8x200xbf16>
    %85 = vector.extract_strided_slice %29 {offsets = [0, 21], sizes = [8, 200], strides = [1, 1]} : vector<8x222xbf16> to vector<8x200xbf16>
    %86 = tpu.concatenate %77, %78, %79, %80, %81, %82, %83, %84, %85 in 0 : vector<8x200xbf16>, vector<8x200xbf16>, vector<8x200xbf16>, vector<8x200xbf16>, vector<8x200xbf16>, vector<8x200xbf16>, vector<8x200xbf16>, vector<8x200xbf16>, vector<8x200xbf16> -> vector<72x200xbf16>
    %cst_56 = arith.constant dense<0.000000e+00> : vector<4x200xf32>
    %87 = tpu.matmul %34, %86, %cst_56 {dimension_numbers = #tpu.dot_dimension_numbers<[1], [0], [0], [1], [0, 0, 1, 1], [], []>} : vector<4x72xbf16>, vector<72x200xbf16>, vector<4x200xf32> -> vector<4x200xf32>
    %88 = vector.broadcast %0 : vector<1x200xf32> to vector<4x200xf32>
    %89 = arith.mulf %87, %88 : vector<4x200xf32>
    %cst_57 = arith.constant dense<0.000000e+00> : vector<4xf32>
    %90 = vector.multi_reduction <add>, %89, %cst_57 [1] : vector<4x200xf32> to vector<4xf32>
    %91 = vector.shape_cast %90 : vector<4xf32> to vector<4x1xf32>
    %92 = arith.addf %72, %91 : vector<4x1xf32>
    %93 = arith.mulf %89, %87 : vector<4x200xf32>
    %cst_58 = arith.constant dense<0.000000e+00> : vector<4xf32>
    %94 = vector.multi_reduction <add>, %93, %cst_58 [1] : vector<4x200xf32> to vector<4xf32>
    %95 = vector.shape_cast %94 : vector<4xf32> to vector<4x1xf32>
    %96 = arith.addf %76, %95 : vector<4x1xf32>
    %97 = vector.extract_strided_slice %27 {offsets = [0, 11], sizes = [8, 200], strides = [1, 1]} : vector<8x222xbf16> to vector<8x200xbf16>
    %98 = vector.extract_strided_slice %29 {offsets = [0, 11], sizes = [8, 200], strides = [1, 1]} : vector<8x222xbf16> to vector<8x200xbf16>
    %99 = vector.extract_strided_slice %27 {offsets = [0, 12], sizes = [8, 200], strides = [1, 1]} : vector<8x222xbf16> to vector<8x200xbf16>
    %100 = vector.extract_strided_slice %31 {offsets = [0, 11], sizes = [8, 200], strides = [1, 1]} : vector<8x222xbf16> to vector<8x200xbf16>
    %101 = vector.extract_strided_slice %33 {offsets = [0, 11], sizes = [8, 200], strides = [1, 1]} : vector<8x222xbf16> to vector<8x200xbf16>
    %102 = vector.extract_strided_slice %31 {offsets = [0, 12], sizes = [8, 200], strides = [1, 1]} : vector<8x222xbf16> to vector<8x200xbf16>
    %103 = vector.extract_strided_slice %27 {offsets = [0, 21], sizes = [8, 200], strides = [1, 1]} : vector<8x222xbf16> to vector<8x200xbf16>
    %104 = vector.extract_strided_slice %29 {offsets = [0, 21], sizes = [8, 200], strides = [1, 1]} : vector<8x222xbf16> to vector<8x200xbf16>
    %105 = vector.extract_strided_slice %27 {offsets = [0, 22], sizes = [8, 200], strides = [1, 1]} : vector<8x222xbf16> to vector<8x200xbf16>
    %106 = tpu.concatenate %97, %98, %99, %100, %101, %102, %103, %104, %105 in 0 : vector<8x200xbf16>, vector<8x200xbf16>, vector<8x200xbf16>, vector<8x200xbf16>, vector<8x200xbf16>, vector<8x200xbf16>, vector<8x200xbf16>, vector<8x200xbf16>, vector<8x200xbf16> -> vector<72x200xbf16>
    %cst_59 = arith.constant dense<0.000000e+00> : vector<4x200xf32>
    %107 = tpu.matmul %34, %106, %cst_59 {dimension_numbers = #tpu.dot_dimension_numbers<[1], [0], [0], [1], [0, 0, 1, 1], [], []>} : vector<4x72xbf16>, vector<72x200xbf16>, vector<4x200xf32> -> vector<4x200xf32>
    %108 = vector.broadcast %0 : vector<1x200xf32> to vector<4x200xf32>
    %109 = arith.mulf %107, %108 : vector<4x200xf32>
    %cst_60 = arith.constant dense<0.000000e+00> : vector<4xf32>
    %110 = vector.multi_reduction <add>, %109, %cst_60 [1] : vector<4x200xf32> to vector<4xf32>
    %111 = vector.shape_cast %110 : vector<4xf32> to vector<4x1xf32>
    %112 = arith.addf %92, %111 : vector<4x1xf32>
    %113 = arith.mulf %109, %107 : vector<4x200xf32>
    %cst_61 = arith.constant dense<0.000000e+00> : vector<4xf32>
    %114 = vector.multi_reduction <add>, %113, %cst_61 [1] : vector<4x200xf32> to vector<4xf32>
    %115 = vector.shape_cast %114 : vector<4xf32> to vector<4x1xf32>
    %116 = arith.addf %96, %115 : vector<4x1xf32>
    %cst_62 = arith.constant 0.001953125 : f32
    %117 = vector.broadcast %cst_62 : f32 to vector<4x1xf32>
    %118 = arith.mulf %112, %117 : vector<4x1xf32>
    %cst_63 = arith.constant 0.001953125 : f32
    %119 = vector.broadcast %cst_63 : f32 to vector<4x1xf32>
    %120 = arith.mulf %116, %119 : vector<4x1xf32>
    %121 = arith.mulf %118, %118 : vector<4x1xf32>
    %122 = arith.subf %120, %121 : vector<4x1xf32>
    %cst_64 = arith.constant 9.99999974E-6 : f32
    %123 = vector.broadcast %cst_64 : f32 to vector<4x1xf32>
    %124 = arith.addf %122, %123 : vector<4x1xf32>
    %125 = math.rsqrt %124 : vector<4x1xf32>
    %126 = arith.mulf %125, %2 : vector<4x1xf32>
    %127 = arith.mulf %118, %126 : vector<4x1xf32>
    %128 = arith.subf %3, %127 : vector<4x1xf32>
    %129 = vector.broadcast %126 : vector<4x1xf32> to vector<4x200xf32>
    %130 = arith.mulf %45, %129 : vector<4x200xf32>
    %131 = vector.broadcast %128 : vector<4x1xf32> to vector<4x200xf32>
    %132 = arith.addf %130, %131 : vector<4x200xf32>
    %cst_65 = arith.constant 0.000000e+00 : f32
    %133 = vector.broadcast %cst_65 : f32 to vector<4x200xf32>
    %134 = arith.maximumf %132, %133 : vector<4x200xf32>
    %135 = vector.broadcast %126 : vector<4x1xf32> to vector<4x200xf32>
    %136 = arith.mulf %67, %135 : vector<4x200xf32>
    %137 = vector.broadcast %128 : vector<4x1xf32> to vector<4x200xf32>
    %138 = arith.addf %136, %137 : vector<4x200xf32>
    %cst_66 = arith.constant 0.000000e+00 : f32
    %139 = vector.broadcast %cst_66 : f32 to vector<4x200xf32>
    %140 = arith.maximumf %138, %139 : vector<4x200xf32>
    %141 = vector.broadcast %126 : vector<4x1xf32> to vector<4x200xf32>
    %142 = arith.mulf %87, %141 : vector<4x200xf32>
    %143 = vector.broadcast %128 : vector<4x1xf32> to vector<4x200xf32>
    %144 = arith.addf %142, %143 : vector<4x200xf32>
    %cst_67 = arith.constant 0.000000e+00 : f32
    %145 = vector.broadcast %cst_67 : f32 to vector<4x200xf32>
    %146 = arith.maximumf %144, %145 : vector<4x200xf32>
    %147 = vector.broadcast %126 : vector<4x1xf32> to vector<4x200xf32>
    %148 = arith.mulf %107, %147 : vector<4x200xf32>
    %149 = vector.broadcast %128 : vector<4x1xf32> to vector<4x200xf32>
    %150 = arith.addf %148, %149 : vector<4x200xf32>
    %cst_68 = arith.constant 0.000000e+00 : f32
    %151 = vector.broadcast %cst_68 : f32 to vector<4x200xf32>
    %152 = arith.maximumf %150, %151 : vector<4x200xf32>
    %153 = vector.broadcast %0 : vector<1x200xf32> to vector<4x200xf32>
    %154 = arith.mulf %134, %153 : vector<4x200xf32>
    %155 = arith.truncf %154 : vector<4x200xf32> to vector<4x200xbf16>
    %c0_69 = arith.constant 0 : index
    %c0_70 = arith.constant 0 : index
    %c11_71 = arith.constant 11 : index
    %156 = vector.load %arg13[%c0_69, %c0_70, %c11_71] : memref<4x4x222xbf16, #tpu.memory_space<vmem>>, vector<1x4x200xbf16>
    %157 = vector.shape_cast %156 : vector<1x4x200xbf16> to vector<4x200xbf16>
    %158 = vector.shape_cast %155 : vector<4x200xbf16> to vector<1x4x200xbf16>
    tpu.vector_store %arg13[%c0_69, %c0_70, %c11_71], %158 {strides = array<i32>} : memref<4x4x222xbf16, #tpu.memory_space<vmem>>, vector<1x4x200xbf16>,
    %159 = vector.broadcast %0 : vector<1x200xf32> to vector<4x200xf32>
    %160 = arith.mulf %140, %159 : vector<4x200xf32>
    %161 = arith.truncf %160 : vector<4x200xf32> to vector<4x200xbf16>
    %c1_72 = arith.constant 1 : index
    %c0_73 = arith.constant 0 : index
    %c11_74 = arith.constant 11 : index
    %162 = vector.load %arg13[%c1_72, %c0_73, %c11_74] : memref<4x4x222xbf16, #tpu.memory_space<vmem>>, vector<1x4x200xbf16>
    %163 = vector.shape_cast %162 : vector<1x4x200xbf16> to vector<4x200xbf16>
    %164 = vector.shape_cast %161 : vector<4x200xbf16> to vector<1x4x200xbf16>
    tpu.vector_store %arg13[%c1_72, %c0_73, %c11_74], %164 {strides = array<i32>} : memref<4x4x222xbf16, #tpu.memory_space<vmem>>, vector<1x4x200xbf16>,
    %165 = vector.broadcast %0 : vector<1x200xf32> to vector<4x200xf32>
    %166 = arith.mulf %146, %165 : vector<4x200xf32>
    %167 = arith.truncf %166 : vector<4x200xf32> to vector<4x200xbf16>
    %c2_75 = arith.constant 2 : index
    %c0_76 = arith.constant 0 : index
    %c11_77 = arith.constant 11 : index
    %168 = vector.load %arg13[%c2_75, %c0_76, %c11_77] : memref<4x4x222xbf16, #tpu.memory_space<vmem>>, vector<1x4x200xbf16>
    %169 = vector.shape_cast %168 : vector<1x4x200xbf16> to vector<4x200xbf16>
    %170 = vector.shape_cast %167 : vector<4x200xbf16> to vector<1x4x200xbf16>
    tpu.vector_store %arg13[%c2_75, %c0_76, %c11_77], %170 {strides = array<i32>} : memref<4x4x222xbf16, #tpu.memory_space<vmem>>, vector<1x4x200xbf16>,
    %171 = vector.broadcast %0 : vector<1x200xf32> to vector<4x200xf32>
    %172 = arith.mulf %152, %171 : vector<4x200xf32>
    %173 = arith.truncf %172 : vector<4x200xf32> to vector<4x200xbf16>
    %c3_78 = arith.constant 3 : index
    %c0_79 = arith.constant 0 : index
    %c11_80 = arith.constant 11 : index
    %174 = vector.load %arg13[%c3_78, %c0_79, %c11_80] : memref<4x4x222xbf16, #tpu.memory_space<vmem>>, vector<1x4x200xbf16>
    %175 = vector.shape_cast %174 : vector<1x4x200xbf16> to vector<4x200xbf16>
    %176 = vector.shape_cast %173 : vector<4x200xbf16> to vector<1x4x200xbf16>
    tpu.vector_store %arg13[%c3_78, %c0_79, %c11_80], %176 {strides = array<i32>} : memref<4x4x222xbf16, #tpu.memory_space<vmem>>, vector<1x4x200xbf16>,
    %c0_81 = arith.constant 0 : index
    %c0_82 = arith.constant 0 : index
    %c0_83 = arith.constant 0 : index
    %177 = vector.load %arg13[%c0_81, %c0_82, %c0_83] : memref<4x4x222xbf16, #tpu.memory_space<vmem>>, vector<1x4x222xbf16>
    %178 = vector.shape_cast %177 : vector<1x4x222xbf16> to vector<4x222xbf16>
    %c1_84 = arith.constant 1 : index
    %c0_85 = arith.constant 0 : index
    %c0_86 = arith.constant 0 : index
    %179 = vector.load %arg13[%c1_84, %c0_85, %c0_86] : memref<4x4x222xbf16, #tpu.memory_space<vmem>>, vector<1x4x222xbf16>
    %180 = vector.shape_cast %179 : vector<1x4x222xbf16> to vector<4x222xbf16>
    %c2_87 = arith.constant 2 : index
    %c0_88 = arith.constant 0 : index
    %c0_89 = arith.constant 0 : index
    %181 = vector.load %arg13[%c2_87, %c0_88, %c0_89] : memref<4x4x222xbf16, #tpu.memory_space<vmem>>, vector<1x4x222xbf16>
    %182 = vector.shape_cast %181 : vector<1x4x222xbf16> to vector<4x222xbf16>
    %c3_90 = arith.constant 3 : index
    %c0_91 = arith.constant 0 : index
    %c0_92 = arith.constant 0 : index
    %183 = vector.load %arg13[%c3_90, %c0_91, %c0_92] : memref<4x4x222xbf16, #tpu.memory_space<vmem>>, vector<1x4x222xbf16>
    %184 = vector.shape_cast %183 : vector<1x4x222xbf16> to vector<4x222xbf16>
    %c0_93 = arith.constant 0 : index
    %c0_94 = arith.constant 0 : index
    %185 = vector.load %arg8[%c0_93, %c0_94] : memref<4x36xbf16, #tpu.memory_space<vmem>>, vector<4x36xbf16>
    %186 = vector.extract_strided_slice %184 {offsets = [0, 0], sizes = [4, 200], strides = [1, 1]} : vector<4x222xbf16> to vector<4x200xbf16>
    %187 = vector.extract_strided_slice %182 {offsets = [0, 1], sizes = [4, 200], strides = [1, 1]} : vector<4x222xbf16> to vector<4x200xbf16>
    %188 = vector.extract_strided_slice %184 {offsets = [0, 1], sizes = [4, 200], strides = [1, 1]} : vector<4x222xbf16> to vector<4x200xbf16>
    %189 = vector.extract_strided_slice %180 {offsets = [0, 10], sizes = [4, 200], strides = [1, 1]} : vector<4x222xbf16> to vector<4x200xbf16>
    %190 = vector.extract_strided_slice %178 {offsets = [0, 11], sizes = [4, 200], strides = [1, 1]} : vector<4x222xbf16> to vector<4x200xbf16>
    %191 = vector.extract_strided_slice %180 {offsets = [0, 11], sizes = [4, 200], strides = [1, 1]} : vector<4x222xbf16> to vector<4x200xbf16>
    %192 = vector.extract_strided_slice %184 {offsets = [0, 10], sizes = [4, 200], strides = [1, 1]} : vector<4x222xbf16> to vector<4x200xbf16>
    %193 = vector.extract_strided_slice %182 {offsets = [0, 11], sizes = [4, 200], strides = [1, 1]} : vector<4x222xbf16> to vector<4x200xbf16>
    %194 = vector.extract_strided_slice %184 {offsets = [0, 11], sizes = [4, 200], strides = [1, 1]} : vector<4x222xbf16> to vector<4x200xbf16>
    %195 = tpu.concatenate %186, %187, %188, %189, %190, %191, %192, %193, %194 in 0 : vector<4x200xbf16>, vector<4x200xbf16>, vector<4x200xbf16>, vector<4x200xbf16>, vector<4x200xbf16>, vector<4x200xbf16>, vector<4x200xbf16>, vector<4x200xbf16>, vector<4x200xbf16> -> vector<36x200xbf16>
    %cst_95 = arith.constant dense<0.000000e+00> : vector<4x200xf32>
    %196 = tpu.matmul %185, %195, %cst_95 {dimension_numbers = #tpu.dot_dimension_numbers<[1], [0], [0], [1], [0, 0, 1, 1], [], []>} : vector<4x36xbf16>, vector<36x200xbf16>, vector<4x200xf32> -> vector<4x200xf32>
    %197 = vector.broadcast %0 : vector<1x200xf32> to vector<4x200xf32>
    %198 = arith.mulf %196, %197 : vector<4x200xf32>
    %cst_96 = arith.constant dense<0.000000e+00> : vector<4xf32>
    %199 = vector.multi_reduction <add>, %198, %cst_96 [1] : vector<4x200xf32> to vector<4xf32>
    %200 = vector.shape_cast %199 : vector<4xf32> to vector<4x1xf32>
    %cst_97 = arith.constant 0.000000e+00 : f32
    %201 = vector.broadcast %cst_97 : f32 to vector<4x1xf32>
    %202 = arith.addf %201, %200 : vector<4x1xf32>
    %203 = arith.mulf %198, %196 : vector<4x200xf32>
    %cst_98 = arith.constant dense<0.000000e+00> : vector<4xf32>
    %204 = vector.multi_reduction <add>, %203, %cst_98 [1] : vector<4x200xf32> to vector<4xf32>
    %205 = vector.shape_cast %204 : vector<4xf32> to vector<4x1xf32>
    %cst_99 = arith.constant 0.000000e+00 : f32
    %206 = vector.broadcast %cst_99 : f32 to vector<4x1xf32>
    %207 = arith.addf %206, %205 : vector<4x1xf32>
    %208 = vector.extract_strided_slice %182 {offsets = [0, 1], sizes = [4, 200], strides = [1, 1]} : vector<4x222xbf16> to vector<4x200xbf16>
    %209 = vector.extract_strided_slice %184 {offsets = [0, 1], sizes = [4, 200], strides = [1, 1]} : vector<4x222xbf16> to vector<4x200xbf16>
    %210 = vector.extract_strided_slice %182 {offsets = [0, 2], sizes = [4, 200], strides = [1, 1]} : vector<4x222xbf16> to vector<4x200xbf16>
    %211 = vector.extract_strided_slice %178 {offsets = [0, 11], sizes = [4, 200], strides = [1, 1]} : vector<4x222xbf16> to vector<4x200xbf16>
    %212 = vector.extract_strided_slice %180 {offsets = [0, 11], sizes = [4, 200], strides = [1, 1]} : vector<4x222xbf16> to vector<4x200xbf16>
    %213 = vector.extract_strided_slice %178 {offsets = [0, 12], sizes = [4, 200], strides = [1, 1]} : vector<4x222xbf16> to vector<4x200xbf16>
    %214 = vector.extract_strided_slice %182 {offsets = [0, 11], sizes = [4, 200], strides = [1, 1]} : vector<4x222xbf16> to vector<4x200xbf16>
    %215 = vector.extract_strided_slice %184 {offsets = [0, 11], sizes = [4, 200], strides = [1, 1]} : vector<4x222xbf16> to vector<4x200xbf16>
    %216 = vector.extract_strided_slice %182 {offsets = [0, 12], sizes = [4, 200], strides = [1, 1]} : vector<4x222xbf16> to vector<4x200xbf16>
    %217 = tpu.concatenate %208, %209, %210, %211, %212, %213, %214, %215, %216 in 0 : vector<4x200xbf16>, vector<4x200xbf16>, vector<4x200xbf16>, vector<4x200xbf16>, vector<4x200xbf16>, vector<4x200xbf16>, vector<4x200xbf16>, vector<4x200xbf16>, vector<4x200xbf16> -> vector<36x200xbf16>
    %cst_100 = arith.constant dense<0.000000e+00> : vector<4x200xf32>
    %218 = tpu.matmul %185, %217, %cst_100 {dimension_numbers = #tpu.dot_dimension_numbers<[1], [0], [0], [1], [0, 0, 1, 1], [], []>} : vector<4x36xbf16>, vector<36x200xbf16>, vector<4x200xf32> -> vector<4x200xf32>
    %219 = vector.broadcast %0 : vector<1x200xf32> to vector<4x200xf32>
    %220 = arith.mulf %218, %219 : vector<4x200xf32>
    %cst_101 = arith.constant dense<0.000000e+00> : vector<4xf32>
    %221 = vector.multi_reduction <add>, %220, %cst_101 [1] : vector<4x200xf32> to vector<4xf32>
    %222 = vector.shape_cast %221 : vector<4xf32> to vector<4x1xf32>
    %223 = arith.addf %202, %222 : vector<4x1xf32>
    %224 = arith.mulf %220, %218 : vector<4x200xf32>
    %cst_102 = arith.constant dense<0.000000e+00> : vector<4xf32>
    %225 = vector.multi_reduction <add>, %224, %cst_102 [1] : vector<4x200xf32> to vector<4xf32>
    %226 = vector.shape_cast %225 : vector<4xf32> to vector<4x1xf32>
    %227 = arith.addf %207, %226 : vector<4x1xf32>
    %228 = vector.extract_strided_slice %180 {offsets = [0, 10], sizes = [4, 200], strides = [1, 1]} : vector<4x222xbf16> to vector<4x200xbf16>
    %229 = vector.extract_strided_slice %178 {offsets = [0, 11], sizes = [4, 200], strides = [1, 1]} : vector<4x222xbf16> to vector<4x200xbf16>
    %230 = vector.extract_strided_slice %180 {offsets = [0, 11], sizes = [4, 200], strides = [1, 1]} : vector<4x222xbf16> to vector<4x200xbf16>
    %231 = vector.extract_strided_slice %184 {offsets = [0, 10], sizes = [4, 200], strides = [1, 1]} : vector<4x222xbf16> to vector<4x200xbf16>
    %232 = vector.extract_strided_slice %182 {offsets = [0, 11], sizes = [4, 200], strides = [1, 1]} : vector<4x222xbf16> to vector<4x200xbf16>
    %233 = vector.extract_strided_slice %184 {offsets = [0, 11], sizes = [4, 200], strides = [1, 1]} : vector<4x222xbf16> to vector<4x200xbf16>
    %234 = vector.extract_strided_slice %180 {offsets = [0, 20], sizes = [4, 200], strides = [1, 1]} : vector<4x222xbf16> to vector<4x200xbf16>
    %235 = vector.extract_strided_slice %178 {offsets = [0, 21], sizes = [4, 200], strides = [1, 1]} : vector<4x222xbf16> to vector<4x200xbf16>
    %236 = vector.extract_strided_slice %180 {offsets = [0, 21], sizes = [4, 200], strides = [1, 1]} : vector<4x222xbf16> to vector<4x200xbf16>
    %237 = tpu.concatenate %228, %229, %230, %231, %232, %233, %234, %235, %236 in 0 : vector<4x200xbf16>, vector<4x200xbf16>, vector<4x200xbf16>, vector<4x200xbf16>, vector<4x200xbf16>, vector<4x200xbf16>, vector<4x200xbf16>, vector<4x200xbf16>, vector<4x200xbf16> -> vector<36x200xbf16>
    %cst_103 = arith.constant dense<0.000000e+00> : vector<4x200xf32>
    %238 = tpu.matmul %185, %237, %cst_103 {dimension_numbers = #tpu.dot_dimension_numbers<[1], [0], [0], [1], [0, 0, 1, 1], [], []>} : vector<4x36xbf16>, vector<36x200xbf16>, vector<4x200xf32> -> vector<4x200xf32>
    %239 = vector.broadcast %0 : vector<1x200xf32> to vector<4x200xf32>
    %240 = arith.mulf %238, %239 : vector<4x200xf32>
    %cst_104 = arith.constant dense<0.000000e+00> : vector<4xf32>
    %241 = vector.multi_reduction <add>, %240, %cst_104 [1] : vector<4x200xf32> to vector<4xf32>
    %242 = vector.shape_cast %241 : vector<4xf32> to vector<4x1xf32>
    %243 = arith.addf %223, %242 : vector<4x1xf32>
    %244 = arith.mulf %240, %238 : vector<4x200xf32>
    %cst_105 = arith.constant dense<0.000000e+00> : vector<4xf32>
    %245 = vector.multi_reduction <add>, %244, %cst_105 [1] : vector<4x200xf32> to vector<4xf32>
    %246 = vector.shape_cast %245 : vector<4xf32> to vector<4x1xf32>
    %247 = arith.addf %227, %246 : vector<4x1xf32>
    %248 = vector.extract_strided_slice %178 {offsets = [0, 11], sizes = [4, 200], strides = [1, 1]} : vector<4x222xbf16> to vector<4x200xbf16>
    %249 = vector.extract_strided_slice %180 {offsets = [0, 11], sizes = [4, 200], strides = [1, 1]} : vector<4x222xbf16> to vector<4x200xbf16>
    %250 = vector.extract_strided_slice %178 {offsets = [0, 12], sizes = [4, 200], strides = [1, 1]} : vector<4x222xbf16> to vector<4x200xbf16>
    %251 = vector.extract_strided_slice %182 {offsets = [0, 11], sizes = [4, 200], strides = [1, 1]} : vector<4x222xbf16> to vector<4x200xbf16>
    %252 = vector.extract_strided_slice %184 {offsets = [0, 11], sizes = [4, 200], strides = [1, 1]} : vector<4x222xbf16> to vector<4x200xbf16>
    %253 = vector.extract_strided_slice %182 {offsets = [0, 12], sizes = [4, 200], strides = [1, 1]} : vector<4x222xbf16> to vector<4x200xbf16>
    %254 = vector.extract_strided_slice %178 {offsets = [0, 21], sizes = [4, 200], strides = [1, 1]} : vector<4x222xbf16> to vector<4x200xbf16>
    %255 = vector.extract_strided_slice %180 {offsets = [0, 21], sizes = [4, 200], strides = [1, 1]} : vector<4x222xbf16> to vector<4x200xbf16>
    %256 = vector.extract_strided_slice %178 {offsets = [0, 22], sizes = [4, 200], strides = [1, 1]} : vector<4x222xbf16> to vector<4x200xbf16>
    %257 = tpu.concatenate %248, %249, %250, %251, %252, %253, %254, %255, %256 in 0 : vector<4x200xbf16>, vector<4x200xbf16>, vector<4x200xbf16>, vector<4x200xbf16>, vector<4x200xbf16>, vector<4x200xbf16>, vector<4x200xbf16>, vector<4x200xbf16>, vector<4x200xbf16> -> vector<36x200xbf16>
    %cst_106 = arith.constant dense<0.000000e+00> : vector<4x200xf32>
    %258 = tpu.matmul %185, %257, %cst_106 {dimension_numbers = #tpu.dot_dimension_numbers<[1], [0], [0], [1], [0, 0, 1, 1], [], []>} : vector<4x36xbf16>, vector<36x200xbf16>, vector<4x200xf32> -> vector<4x200xf32>
    %259 = vector.broadcast %0 : vector<1x200xf32> to vector<4x200xf32>
    %260 = arith.mulf %258, %259 : vector<4x200xf32>
    %cst_107 = arith.constant dense<0.000000e+00> : vector<4xf32>
    %261 = vector.multi_reduction <add>, %260, %cst_107 [1] : vector<4x200xf32> to vector<4xf32>
    %262 = vector.shape_cast %261 : vector<4xf32> to vector<4x1xf32>
    %263 = arith.addf %243, %262 : vector<4x1xf32>
    %264 = arith.mulf %260, %258 : vector<4x200xf32>
    %cst_108 = arith.constant dense<0.000000e+00> : vector<4xf32>
    %265 = vector.multi_reduction <add>, %264, %cst_108 [1] : vector<4x200xf32> to vector<4xf32>
    %266 = vector.shape_cast %265 : vector<4xf32> to vector<4x1xf32>
    %267 = arith.addf %247, %266 : vector<4x1xf32>
    %cst_109 = arith.constant 0.001953125 : f32
    %268 = vector.broadcast %cst_109 : f32 to vector<4x1xf32>
    %269 = arith.mulf %263, %268 : vector<4x1xf32>
    %cst_110 = arith.constant 0.001953125 : f32
    %270 = vector.broadcast %cst_110 : f32 to vector<4x1xf32>
    %271 = arith.mulf %267, %270 : vector<4x1xf32>
    %272 = arith.mulf %269, %269 : vector<4x1xf32>
    %273 = arith.subf %271, %272 : vector<4x1xf32>
    %cst_111 = arith.constant 9.99999974E-6 : f32
    %274 = vector.broadcast %cst_111 : f32 to vector<4x1xf32>
    %275 = arith.addf %273, %274 : vector<4x1xf32>
    %276 = math.rsqrt %275 : vector<4x1xf32>
    %277 = arith.mulf %276, %4 : vector<4x1xf32>
    %278 = arith.mulf %269, %277 : vector<4x1xf32>
    %279 = arith.subf %5, %278 : vector<4x1xf32>
    %280 = vector.broadcast %277 : vector<4x1xf32> to vector<4x200xf32>
    %281 = arith.mulf %196, %280 : vector<4x200xf32>
    %282 = vector.broadcast %279 : vector<4x1xf32> to vector<4x200xf32>
    %283 = arith.addf %281, %282 : vector<4x200xf32>
    %cst_112 = arith.constant 0.000000e+00 : f32
    %284 = vector.broadcast %cst_112 : f32 to vector<4x200xf32>
    %285 = arith.maximumf %283, %284 : vector<4x200xf32>
    %286 = vector.broadcast %277 : vector<4x1xf32> to vector<4x200xf32>
    %287 = arith.mulf %218, %286 : vector<4x200xf32>
    %288 = vector.broadcast %279 : vector<4x1xf32> to vector<4x200xf32>
    %289 = arith.addf %287, %288 : vector<4x200xf32>
    %cst_113 = arith.constant 0.000000e+00 : f32
    %290 = vector.broadcast %cst_113 : f32 to vector<4x200xf32>
    %291 = arith.maximumf %289, %290 : vector<4x200xf32>
    %292 = vector.broadcast %277 : vector<4x1xf32> to vector<4x200xf32>
    %293 = arith.mulf %238, %292 : vector<4x200xf32>
    %294 = vector.broadcast %279 : vector<4x1xf32> to vector<4x200xf32>
    %295 = arith.addf %293, %294 : vector<4x200xf32>
    %cst_114 = arith.constant 0.000000e+00 : f32
    %296 = vector.broadcast %cst_114 : f32 to vector<4x200xf32>
    %297 = arith.maximumf %295, %296 : vector<4x200xf32>
    %298 = vector.broadcast %277 : vector<4x1xf32> to vector<4x200xf32>
    %299 = arith.mulf %258, %298 : vector<4x200xf32>
    %300 = vector.broadcast %279 : vector<4x1xf32> to vector<4x200xf32>
    %301 = arith.addf %299, %300 : vector<4x200xf32>
    %cst_115 = arith.constant 0.000000e+00 : f32
    %302 = vector.broadcast %cst_115 : f32 to vector<4x200xf32>
    %303 = arith.maximumf %301, %302 : vector<4x200xf32>
    %c0_116 = arith.constant 0 : index
    %c0_117 = arith.constant 0 : index
    %c0_118 = arith.constant 0 : index
    %304 = vector.load %arg11[%c0_116, %c0_117, %c0_118] : memref<4x4x200xf32, #tpu.memory_space<vmem>>, vector<1x4x200xf32>
    %305 = vector.shape_cast %304 : vector<1x4x200xf32> to vector<4x200xf32>
    %306 = vector.shape_cast %285 : vector<4x200xf32> to vector<1x4x200xf32>
    tpu.vector_store %arg11[%c0_116, %c0_117, %c0_118], %306 {strides = array<i32>} : memref<4x4x200xf32, #tpu.memory_space<vmem>>, vector<1x4x200xf32>,
    %c1_119 = arith.constant 1 : index
    %c0_120 = arith.constant 0 : index
    %c0_121 = arith.constant 0 : index
    %307 = vector.load %arg11[%c1_119, %c0_120, %c0_121] : memref<4x4x200xf32, #tpu.memory_space<vmem>>, vector<1x4x200xf32>
    %308 = vector.shape_cast %307 : vector<1x4x200xf32> to vector<4x200xf32>
    %309 = vector.shape_cast %291 : vector<4x200xf32> to vector<1x4x200xf32>
    tpu.vector_store %arg11[%c1_119, %c0_120, %c0_121], %309 {strides = array<i32>} : memref<4x4x200xf32, #tpu.memory_space<vmem>>, vector<1x4x200xf32>,
    %c2_122 = arith.constant 2 : index
    %c0_123 = arith.constant 0 : index
    %c0_124 = arith.constant 0 : index
    %310 = vector.load %arg11[%c2_122, %c0_123, %c0_124] : memref<4x4x200xf32, #tpu.memory_space<vmem>>, vector<1x4x200xf32>
    %311 = vector.shape_cast %310 : vector<1x4x200xf32> to vector<4x200xf32>
    %312 = vector.shape_cast %297 : vector<4x200xf32> to vector<1x4x200xf32>
    tpu.vector_store %arg11[%c2_122, %c0_123, %c0_124], %312 {strides = array<i32>} : memref<4x4x200xf32, #tpu.memory_space<vmem>>, vector<1x4x200xf32>,
    %c3_125 = arith.constant 3 : index
    %c0_126 = arith.constant 0 : index
    %c0_127 = arith.constant 0 : index
    %313 = vector.load %arg11[%c3_125, %c0_126, %c0_127] : memref<4x4x200xf32, #tpu.memory_space<vmem>>, vector<1x4x200xf32>
    %314 = vector.shape_cast %313 : vector<1x4x200xf32> to vector<4x200xf32>
    %315 = vector.shape_cast %303 : vector<4x200xf32> to vector<1x4x200xf32>
    tpu.vector_store %arg11[%c3_125, %c0_126, %c0_127], %315 {strides = array<i32>} : memref<4x4x200xf32, #tpu.memory_space<vmem>>, vector<1x4x200xf32>,
    return
  }
}

</mosaic_0001>

<llo_original>
// kernel: tile.8
$region0: #{tile.8}
  #allocation0 [shape = 's32[1]{0}', space=sflag, size = 0x4, scoped, tag = 'scoped memory for tile.8']
  %s0 = inlined_call_operand.vmem [shape: f32[4], index: 0, kind: input, shape index: {}]
  %s1 = inlined_call_operand.vmem [shape: f32[4,4], index: 1, kind: output, shape index: {}]
  // Predicated region
  $region2: #{tile.8} parent=0 // pred_check
    _
  $region3: #{tile.8} parent=0 // pred_check_branch
    %3 = sbr.rel (0) target = $region5
  $region4: #{tile.8} parent=0 // pred_region
    _
  $region5: #{tile.8} parent=0 // pred_fallthru
    _
  %v4 = vld [vmem:[%s0] ss:$0 sm:$0xff]
  %5 = vst [vmem:[%s1] sm:$0xf] %v4

// kernel: tile.0
$region0: #{tile.0}
  %s0 = inlined_call_operand.vmem [shape: f32[4,4], index: 0, kind: input, shape index: {}]
  %s1 = inlined_call_operand.vmem [shape: f32[16,1], index: 1, kind: output, shape index: {}]
  $region1: #{tile.0} parent=0
    #allocation0 [shape = 'u8[4096]{0}', space=vmem, size = 0x1000, scoped, tag = 'scoped mem for input reshape']
    %s3 = sshllo.u32 0, 4
    %v4 = vld [vmem:[%s0] sm:%s3]
    %5 = vst [vmem:[#allocation0] sm:%s3] %v4
    %v6 = vld [vmem:[#allocation0] sm:$0xf]
    %vm7 = vcmask 7168
    %8 = vst.msk [vmem:[%s1] ss:$4 sm:$0xf] %vm7, %v6
    %v9 = vld [vmem:[#allocation0] sm:$0xf]
    %10 = vrot.lane.b32.xlu0 %v9, 127
    %v11 = vpop.permute.xlu0 %10
    %vm12 = vcmask 7168
    %s13 = scalar_lea.vmem %s1, 1
    %14 = vst.msk [vmem:[%s13] ss:$4 sm:$0xf] %vm12, %v11
    %v15 = vld [vmem:[#allocation0] sm:$0xf]
    %16 = vrot.lane.b32.xlu0 %v15, 126
    %v17 = vpop.permute.xlu0 %16
    %vm18 = vcmask 7168
    %s19 = scalar_lea.vmem %s1, 2
    %20 = vst.msk [vmem:[%s19] ss:$4 sm:$0xf] %vm18, %v17
    %v21 = vld [vmem:[#allocation0] sm:$0xf]
    %22 = vrot.lane.b32.xlu0 %v21, 125
    %v23 = vpop.permute.xlu0 %22
    %vm24 = vcmask 7168
    %s25 = scalar_lea.vmem %s1, 3
    %26 = vst.msk [vmem:[%s25] ss:$4 sm:$0xf] %vm24, %v23

// kernel: unet_decoder_block_forward.1
$region0: #{unet_decoder_block_forward.1}
  #allocation0 [shape = 'u32[]', space=smem, size = 0x4, offset = 0x4, fixed_abs, tag = 'smem constant byte address 0x4 - core index']
  #allocation1 [shape = 'u32[144,128]{1,0:T(1,128)}', space=vmem, size = 0x12000, scoped, tag = 'internal scratch']
  #allocation2 [shape = 'bf16[4,8,222]{2,1,0:T(8,128)(2,1)}', space=vmem, size = 0x4000, scoped, tag = 'scratch operand']
  #allocation3 [shape = 'bf16[4,4,222]{2,1,0:T(4,128)(2,1)}', space=vmem, size = 0x2000, scoped, tag = 'scratch operand']
  %s0 = inlined_call_operand.vmem [shape: bf16[8,200], index: 0, kind: input, shape index: {}]
  %s1 = inlined_call_operand.vmem [shape: bf16[4,4,200], index: 1, kind: input, shape index: {}]
  %s2 = inlined_call_operand.vmem [shape: f32[1,200], index: 2, kind: input, shape index: {}]
  %s3 = inlined_call_operand.vmem [shape: bf16[16,8], index: 3, kind: input, shape index: {}]
  %s4 = inlined_call_operand.vmem [shape: f32[16,1], index: 4, kind: input, shape index: {}]
  %s5 = inlined_call_operand.vmem [shape: bf16[4,72], index: 5, kind: input, shape index: {}]
  %s6 = inlined_call_operand.vmem [shape: f32[4,1], index: 6, kind: input, shape index: {}]
  %s7 = inlined_call_operand.vmem [shape: f32[4,1], index: 7, kind: input, shape index: {}]
  %s8 = inlined_call_operand.vmem [shape: bf16[4,36], index: 8, kind: input, shape index: {}]
  %s9 = inlined_call_operand.vmem [shape: f32[4,1], index: 9, kind: input, shape index: {}]
  %s10 = inlined_call_operand.vmem [shape: f32[4,1], index: 10, kind: input, shape index: {}]
  %s11 = inlined_call_operand.vmem [shape: f32[4,4,200], index: 11, kind: output, shape index: {}]
  %s12 = sld [smem:[#allocation0]]
  $region54: #{unet_decoder_block_forward.1} parent=0
    _
  %s14 = ssub.s32 1, %s12
  %s15 = scalar_select 0, %s14, %s12
  // Predicated region
  $region2: #{unet_decoder_block_forward.1} parent=0 // pred_check
    _
  $region3: #{unet_decoder_block_forward.1} parent=0 // pred_check_branch
    %17 = sbr.rel (0) target = $region5
  $region4: #{unet_decoder_block_forward.1} parent=0 // pred_region
    _
  $region5: #{unet_decoder_block_forward.1} parent=0 // pred_fallthru
    _
  // Predicated region
  $region6: #{unet_decoder_block_forward.1} parent=0 // pred_check
    _
  $region7: #{unet_decoder_block_forward.1} parent=0 // pred_check_branch
    %19 = sbr.rel (0) target = $region9
  $region8: #{unet_decoder_block_forward.1} parent=0 // pred_region
    _
  $region9: #{unet_decoder_block_forward.1} parent=0 // pred_fallthru
    _
  // Predicated region
  $region10: #{unet_decoder_block_forward.1} parent=0 // pred_check
    _
  $region11: #{unet_decoder_block_forward.1} parent=0 // pred_check_branch
    %21 = sbr.rel (0) target = $region13
  $region12: #{unet_decoder_block_forward.1} parent=0 // pred_region
    _
  $region13: #{unet_decoder_block_forward.1} parent=0 // pred_fallthru
    _
  // Predicated region
  $region14: #{unet_decoder_block_forward.1} parent=0 // pred_check
    _
  $region15: #{unet_decoder_block_forward.1} parent=0 // pred_check_branch
    %23 = sbr.rel (0) target = $region17
  $region16: #{unet_decoder_block_forward.1} parent=0 // pred_region
    _
  $region17: #{unet_decoder_block_forward.1} parent=0 // pred_fallthru
    _
  // Predicated region
  $region18: #{unet_decoder_block_forward.1} parent=0 // pred_check
    _
  $region19: #{unet_decoder_block_forward.1} parent=0 // pred_check_branch
    %25 = sbr.rel (0) target = $region21
  $region20: #{unet_decoder_block_forward.1} parent=0 // pred_region
    _
  $region21: #{unet_decoder_block_forward.1} parent=0 // pred_fallthru
    _
  // Predicated region
  $region22: #{unet_decoder_block_forward.1} parent=0 // pred_check
    _
  $region23: #{unet_decoder_block_forward.1} parent=0 // pred_check_branch
    %27 = sbr.rel (0) target = $region25
  $region24: #{unet_decoder_block_forward.1} parent=0 // pred_region
    _
  $region25: #{unet_decoder_block_forward.1} parent=0 // pred_fallthru
    _
  // Predicated region
  $region26: #{unet_decoder_block_forward.1} parent=0 // pred_check
    _
  $region27: #{unet_decoder_block_forward.1} parent=0 // pred_check_branch
    %29 = sbr.rel (0) target = $region29
  $region28: #{unet_decoder_block_forward.1} parent=0 // pred_region
    _
  $region29: #{unet_decoder_block_forward.1} parent=0 // pred_fallthru
    _
  // Predicated region
  $region30: #{unet_decoder_block_forward.1} parent=0 // pred_check
    _
  $region31: #{unet_decoder_block_forward.1} parent=0 // pred_check_branch
    %31 = sbr.rel (0) target = $region33
  $region32: #{unet_decoder_block_forward.1} parent=0 // pred_region
    _
  $region33: #{unet_decoder_block_forward.1} parent=0 // pred_fallthru
    _
  // Predicated region
  $region34: #{unet_decoder_block_forward.1} parent=0 // pred_check
    _
  $region35: #{unet_decoder_block_forward.1} parent=0 // pred_check_branch
    %33 = sbr.rel (0) target = $region37
  $region36: #{unet_decoder_block_forward.1} parent=0 // pred_region
    _
  $region37: #{unet_decoder_block_forward.1} parent=0 // pred_fallthru
    _
  // Predicated region
  $region38: #{unet_decoder_block_forward.1} parent=0 // pred_check
    _
  $region39: #{unet_decoder_block_forward.1} parent=0 // pred_check_branch
    %35 = sbr.rel (0) target = $region41
  $region40: #{unet_decoder_block_forward.1} parent=0 // pred_region
    _
  $region41: #{unet_decoder_block_forward.1} parent=0 // pred_fallthru
    _
  // Predicated region
  $region42: #{unet_decoder_block_forward.1} parent=0 // pred_check
    _
  $region43: #{unet_decoder_block_forward.1} parent=0 // pred_check_branch
    %37 = sbr.rel (0) target = $region45
  $region44: #{unet_decoder_block_forward.1} parent=0 // pred_region
    _
  $region45: #{unet_decoder_block_forward.1} parent=0 // pred_fallthru
    _
  %v39 = vld [vmem:[%s2] sm:$0x3]
  %v40 = vld [vmem:[%s4] sm:$0xff]
  %v41 = vld [vmem:[%s4 + $0x8] sm:$0xff]
  %v42 = vld [vmem:[%s6] sm:$0xf]
  %v43 = vld [vmem:[%s7] sm:$0xf]
  %v44 = vld [vmem:[%s9] sm:$0xf]
  %v45 = vld [vmem:[%s10] sm:$0xf]
  %vm46 = vcmask 84992
  %47 = vst.msk [vmem:[#allocation2] sm:$0xf] %vm46, 0
  %48 = vst.msk [vmem:[#allocation2 + $0x8] sm:$0xf] %vm46, 0
  %49 = vst.msk [vmem:[#allocation2 + $0x10] sm:$0xf] %vm46, 0
  %50 = vst.msk [vmem:[#allocation2 + $0x18] sm:$0xf] %vm46, 0
  %vm51 = vcmask 765592
  %52 = vst.msk [vmem:[#allocation2 + $0x4] sm:$0xf] %vm51, 0
  %53 = vst.msk [vmem:[#allocation2 + $0xc] sm:$0xf] %vm51, 0
  %54 = vst.msk [vmem:[#allocation2 + $0x14] sm:$0xf] %vm51, 0
  %55 = vst.msk [vmem:[#allocation2 + $0x1c] sm:$0xf] %vm51, 0
  %vm56 = vcmask 82944
  %57 = vst.msk [vmem:[#allocation3] sm:$0x3] %vm56, 0
  %58 = vst.msk [vmem:[#allocation3 + $0x4] sm:$0x3] %vm56, 0
  %59 = vst.msk [vmem:[#allocation3 + $0x8] sm:$0x3] %vm56, 0
  %60 = vst.msk [vmem:[#allocation3 + $0xc] sm:$0x3] %vm56, 0
  %vm61 = vcmask 763544
  %62 = vst.msk [vmem:[#allocation3 + $0x2] sm:$0x3] %vm61, 0
  %63 = vst.msk [vmem:[#allocation3 + $0x6] sm:$0x3] %vm61, 0
  %64 = vst.msk [vmem:[#allocation3 + $0xa] sm:$0x3] %vm61, 0
  %65 = vst.msk [vmem:[#allocation3 + $0xe] sm:$0x3] %vm61, 0
  %v66 = vld [vmem:[%s3] sm:$0xf]
  %v67 = vld [vmem:[%s3 + $0x4] sm:$0xf]
  %v68 = vld [vmem:[%s0] sm:$0xff]
  %70 = vset.pattern.permute.xlu0 0
  %71 = vperm.xlu0 %70, %v40
  %v72 = vpop.permute.xlu0 %71
  %75 = vset.pattern.permute.xlu0 0
  %76 = vperm.xlu0 %75, %v41
  %v77 = vpop.permute.xlu0 %76
  %v81 = vunpack.c.l.b16 %v66
  %v82 = vunpack.c.l.b16 %v67
  %v83 = vpack.c.b16 %v82, %v81
  %v85 = vunpack.c.l.b16 %v68
  %v86 = vunpack.c.h.b16 %v68
  %v87 = vpack.c.b16 %v85, %v85
  %v88 = vpack.c.b16 %v86, %v86
  %vm89 = vcmask 64512
  %v91 = vsel %vm89, %v83, 0
  %vm93 = vcmask 1043456
  %v95 = vsel %vm93, %v87, 0
  %v98 = vsel %vm93, %v88, 0
  %100 = vmatprep.subr.bf16.mxu0 %v98
  %101 = vmatpush1.bf16.msra.mxu0 %v95
  %102 = vmatprep.subr.bf16.mxu0 0
  %103 = vmatpush1.bf16.msra.mxu0 0
  %104 = vmatprep.subr.bf16.mxu0 0
  %105 = vmatpush1.bf16.msra.mxu0 0
  %106 = vmatprep.subr.bf16.mxu0 0
  %107 = vmatpush1.bf16.msra.mxu0 0
  %108 = vmatprep.subr.bf16.mxu0 0
  %109 = vmatpush1.bf16.msra.mxu0 0
  %110 = vmatprep.subr.bf16.mxu0 0
  %111 = vmatpush1.bf16.msra.mxu0 0
  %112 = vmatprep.subr.bf16.mxu0 0
  %113 = vmatpush1.bf16.msra.mxu0 0
  %114 = vmatprep.subr.bf16.mxu0 0
  %115 = vmatpush1.bf16.msra.mxu0 0
  %116 = vmatprep.subr.bf16.mxu0 0
  %117 = vmatpush1.bf16.msra.mxu0 0
  %118 = vmatprep.subr.bf16.mxu0 0
  %119 = vmatpush1.bf16.msra.mxu0 0
  %120 = vmatprep.subr.bf16.mxu0 0
  %121 = vmatpush1.bf16.msra.mxu0 0
  %122 = vmatprep.subr.bf16.mxu0 0
  %123 = vmatpush1.bf16.msra.mxu0 0
  %124 = vmatprep.subr.bf16.mxu0 0
  %125 = vmatpush1.bf16.msra.mxu0 0
  %126 = vmatprep.subr.bf16.mxu0 0
  %127 = vmatpush1.bf16.msra.mxu0 0
  %128 = vmatprep.subr.bf16.mxu0 0
  %129 = vmatpush1.bf16.msra.mxu0 0
  %130 = vmatprep.subr.bf16.mxu0 0
  %131 = vmatpush1.bf16.msra.mxu0 0
  %132 = vmatprep.mubr.bf16.mxu0 0
  %133 = vmatmul.mubr.bf16.gmra.mrb[0].mxu0 %v91
  %v134 = vpop.f32.mrb[0].mxu0
  %v135 = vadd.f32 %v72, %v134
  %v136 = vpop.f32.mrb[0].mxu0
  %v137 = vadd.f32 %v72, %v136
  %v138 = vpop.f32.mrb[0].mxu0
  %v139 = vadd.f32 %v77, %v138
  %v140 = vpop.f32.mrb[0].mxu0
  %v141 = vadd.f32 %v77, %v140
  %142 = vdwg.mxu0
  %v144 = vlaneseq
  %v145 = vshrl.u32 %v144, 7
  %v146 = vsub.s32 0, %v145
  %v147 = vrot.slane %v39, %v146
  %v148 = vlaneseq
  %v149 = vshrl.u32 %v148, 7
  %v150 = vsub.s32 1, %v149
  %v151 = vrot.slane %v39, %v150
  %v154 = vmul.f32 %v135, %v147
  %v155 = vmul.f32 %v137, %v151
  %v156 = vmul.f32 %v139, %v147
  %v157 = vmul.f32 %v141, %v151
  %v162 = vcombine.low %v154, %v155
  %v163 = vcombine.high %v154, %v155
  %v164 = vcombine.low %v156, %v157
  %v165 = vcombine.high %v156, %v157
  %v170 = vcombine.high %v162, %v162
  %v171 = vcombine.high %v163, %v163
  %v172 = vcombine.high %v164, %v164
  %v173 = vcombine.high %v165, %v165
  %v178 = vpack.c.bf16 %v162, %v162
  %v179 = vpack.c.bf16 %v170, %v170
  %v180 = vpack.c.bf16 %v163, %v163
  %v181 = vpack.c.bf16 %v171, %v171
  %v182 = vpack.c.bf16 %v164, %v164
  %v183 = vpack.c.bf16 %v172, %v172
  %v184 = vpack.c.bf16 %v165, %v165
  %v185 = vpack.c.bf16 %v173, %v173
  %v194 = vunpack.c.l.b16 %v178
  %v195 = vunpack.c.l.b16 %v179
  %v196 = vunpack.c.l.b16 %v180
  %v197 = vunpack.c.l.b16 %v181
  %v198 = vunpack.c.l.b16 %v182
  %v199 = vunpack.c.l.b16 %v183
  %v200 = vunpack.c.l.b16 %v184
  %v201 = vunpack.c.l.b16 %v185
  %v202 = vpack.c.b16 %v195, %v194
  %v203 = vpack.c.b16 %v197, %v196
  %v204 = vpack.c.b16 %v199, %v198
  %v205 = vpack.c.b16 %v201, %v200
  %206 = vrot.lane.b32.xlu0 %v202, 11
  %v207 = vpop.permute.xlu0 %206
  %208 = vrot.lane.b32.xlu0 %v203, 11
  %v209 = vpop.permute.xlu0 %208
  %210 = vrot.lane.b32.xlu0 %v204, 11
  %v211 = vpop.permute.xlu0 %210
  %212 = vrot.lane.b32.xlu0 %v205, 11
  %v213 = vpop.permute.xlu0 %212
  %v214 = vrot.slane %v207, 4
  %v215 = vrot.slane %v209, 4
  %v216 = vrot.slane %v211, 4
  %v217 = vrot.slane %v213, 4
  %vm218 = vcmask 89088
  %v219 = vsel %vm218, %v214, %v207
  %v220 = vsel %vm218, %v215, %v209
  %v221 = vsel %vm218, %v216, %v211
  %v222 = vsel %vm218, %v217, %v213
  %vm227 = vcmask 1041496
  %vm228 = vcmask 676868
  %vm229 = vmor %vm228, %vm227
  %230 = vst.msk [vmem:[#allocation2] sm:$0x33] %vm229, %v219
  %231 = vst.msk [vmem:[#allocation2 + $0x8] sm:$0x33] %vm229, %v220
  %232 = vst.msk [vmem:[#allocation2 + $0x10] sm:$0x33] %vm229, %v221
  %233 = vst.msk [vmem:[#allocation2 + $0x18] sm:$0x33] %vm229, %v222
  %v234 = vld [vmem:[%s1] sm:$0xf]
  %v235 = vld [vmem:[%s1 + $0x4] sm:$0xf]
  %v236 = vld [vmem:[%s1 + $0x8] sm:$0xf]
  %v237 = vld [vmem:[%s1 + $0xc] sm:$0xf]
  %v242 = vcombine.low %v234, %v234
  %v244 = vunpack.c.l.s4 1983009808
  %v245 = vunpack.c.0.s8 %v244
  %v246 = vlaneseq
  %v247 = vshrl.u32 %v246, 7
  %v248 = vsub.s32 %v245, %v247
  %v249 = vrot.slane %v242, %v248
  %v250 = vcombine.low %v235, %v235
  %v252 = vunpack.c.l.s4 1983009808
  %v253 = vunpack.c.0.s8 %v252
  %v254 = vlaneseq
  %v255 = vshrl.u32 %v254, 7
  %v256 = vsub.s32 %v253, %v255
  %v257 = vrot.slane %v250, %v256
  %v258 = vcombine.low %v236, %v236
  %v260 = vunpack.c.l.s4 1983009808
  %v261 = vunpack.c.0.s8 %v260
  %v262 = vlaneseq
  %v263 = vshrl.u32 %v262, 7
  %v264 = vsub.s32 %v261, %v263
  %v265 = vrot.slane %v258, %v264
  %v266 = vcombine.low %v237, %v237
  %v268 = vunpack.c.l.s4 1983009808
  %v269 = vunpack.c.0.s8 %v268
  %v270 = vlaneseq
  %v271 = vshrl.u32 %v270, 7
  %v272 = vsub.s32 %v269, %v271
  %v273 = vrot.slane %v266, %v272
  %274 = vrot.lane.b32.xlu0 %v249, 11
  %v275 = vpop.permute.xlu0 %274
  %276 = vrot.lane.b32.xlu0 %v257, 11
  %v277 = vpop.permute.xlu0 %276
  %278 = vrot.lane.b32.xlu0 %v265, 11
  %v279 = vpop.permute.xlu0 %278
  %280 = vrot.lane.b32.xlu0 %v273, 11
  %v281 = vpop.permute.xlu0 %280
  %v282 = vrot.slane %v275, 4
  %v283 = vrot.slane %v277, 4
  %v284 = vrot.slane %v279, 4
  %v285 = vrot.slane %v281, 4
  %v286 = vsel %vm218, %v282, %v275
  %v287 = vsel %vm218, %v283, %v277
  %v288 = vsel %vm218, %v284, %v279
  %v289 = vsel %vm218, %v285, %v281
  %vm294 = vcmask 1043546
  %vm295 = vcmask 678918
  %vm296 = vmor %vm295, %vm294
  %297 = vst.msk [vmem:[#allocation2] sm:$0xcc] %vm296, %v286
  %298 = vst.msk [vmem:[#allocation2 + $0x8] sm:$0xcc] %vm296, %v287
  %299 = vst.msk [vmem:[#allocation2 + $0x10] sm:$0xcc] %vm296, %v288
  %300 = vst.msk [vmem:[#allocation2 + $0x18] sm:$0xcc] %vm296, %v289
  %v301 = vld [vmem:[#allocation2] sm:$0xff]
  %s302 = scalar_lea.vmem [#allocation2], 8
  %v303 = vld [vmem:[%s302] sm:$0xff]
  %s304 = scalar_lea.vmem [#allocation2], 16
  %v305 = vld [vmem:[%s304] sm:$0xff]
  %s306 = scalar_lea.vmem [#allocation2], 24
  %v307 = vld [vmem:[%s306] sm:$0xff]
  %v308 = vld [vmem:[%s5] sm:$0x3]
  %v310 = vunpack.c.l.b16 %v307
  %v311 = vunpack.c.h.b16 %v307
  %v312 = vpack.c.b16 %v310, %v310
  %v313 = vpack.c.b16 %v311, %v311
  %v315 = vunpack.c.l.b16 %v305
  %v316 = vunpack.c.h.b16 %v305
  %v317 = vpack.c.b16 %v315, %v315
  %v318 = vpack.c.b16 %v316, %v316
  %319 = vrot.lane.b32.xlu0 %v317, 127
  %v320 = vpop.permute.xlu0 %319
  %321 = vrot.lane.b32.xlu0 %v318, 127
  %v322 = vpop.permute.xlu0 %321
  %vm323 = vcmask 1039360
  %v324 = vsel %vm323, %v320, %v322
  %325 = vrot.lane.b32.xlu0 %v312, 127
  %v326 = vpop.permute.xlu0 %325
  %327 = vrot.lane.b32.xlu0 %v313, 127
  %v328 = vpop.permute.xlu0 %327
  %v329 = vsel %vm323, %v326, %v328
  %v331 = vunpack.c.l.b16 %v303
  %v332 = vunpack.c.h.b16 %v303
  %v333 = vpack.c.b16 %v331, %v331
  %v334 = vpack.c.b16 %v332, %v332
  %335 = vrot.lane.b32.xlu0 %v333, 118
  %v336 = vpop.permute.xlu0 %335
  %337 = vrot.lane.b32.xlu0 %v334, 118
  %v338 = vpop.permute.xlu0 %337
  %vm339 = vcmask 965632
  %v340 = vsel %vm339, %v336, %v338
  %v342 = vunpack.c.l.b16 %v301
  %v343 = vunpack.c.h.b16 %v301
  %v344 = vpack.c.b16 %v342, %v342
  %v345 = vpack.c.b16 %v343, %v343
  %346 = vrot.lane.b32.xlu0 %v344, 117
  %v347 = vpop.permute.xlu0 %346
  %348 = vrot.lane.b32.xlu0 %v345, 117
  %v349 = vpop.permute.xlu0 %348
  %vm350 = vcmask 957440
  %v351 = vsel %vm350, %v347, %v349
  %352 = vrot.lane.b32.xlu0 %v333, 117
  %v353 = vpop.permute.xlu0 %352
  %354 = vrot.lane.b32.xlu0 %v334, 117
  %v355 = vpop.permute.xlu0 %354
  %v356 = vsel %vm350, %v353, %v355
  %357 = vrot.lane.b32.xlu0 %v312, 118
  %v358 = vpop.permute.xlu0 %357
  %359 = vrot.lane.b32.xlu0 %v313, 118
  %v360 = vpop.permute.xlu0 %359
  %v361 = vsel %vm339, %v358, %v360
  %362 = vrot.lane.b32.xlu0 %v317, 117
  %v363 = vpop.permute.xlu0 %362
  %364 = vrot.lane.b32.xlu0 %v318, 117
  %v365 = vpop.permute.xlu0 %364
  %v366 = vsel %vm350, %v363, %v365
  %367 = vrot.lane.b32.xlu0 %v312, 117
  %v368 = vpop.permute.xlu0 %367
  %369 = vrot.lane.b32.xlu0 %v313, 117
  %v370 = vpop.permute.xlu0 %369
  %v371 = vsel %vm350, %v368, %v370
  %v374 = vsel %vm93, %v312, %v324
  %v378 = vsel %vm93, %v313, %v322
  %v382 = vsel %vm93, %v329, %v340
  %v386 = vsel %vm93, %v328, %v338
  %v390 = vsel %vm93, %v351, %v356
  %v394 = vsel %vm93, %v349, %v355
  %v398 = vsel %vm93, %v361, %v366
  %v402 = vsel %vm93, %v360, %v365
  %vm404 = vcmask 588800
  %v406 = vsel %vm404, %v308, 0
  %v409 = vsel %vm93, %v371, 0
  %v412 = vsel %vm93, %v370, 0
  %414 = vmatprep.subr.bf16.mxu0 %v378
  %415 = vmatpush1.bf16.msra.mxu0 %v374
  %416 = vmatprep.subr.bf16.mxu0 %v386
  %417 = vmatpush1.bf16.msra.mxu0 %v382
  %418 = vmatprep.subr.bf16.mxu0 %v394
  %419 = vmatpush1.bf16.msra.mxu0 %v390
  %420 = vmatprep.subr.bf16.mxu0 %v402
  %421 = vmatpush1.bf16.msra.mxu0 %v398
  %422 = vmatprep.subr.bf16.mxu0 %v412
  %423 = vmatpush1.bf16.msra.mxu0 %v409
  %424 = vmatprep.subr.bf16.mxu0 0
  %425 = vmatpush1.bf16.msra.mxu0 0
  %426 = vmatprep.subr.bf16.mxu0 0
  %427 = vmatpush1.bf16.msra.mxu0 0
  %428 = vmatprep.subr.bf16.mxu0 0
  %429 = vmatpush1.bf16.msra.mxu0 0
  %430 = vmatprep.subr.bf16.mxu0 0
  %431 = vmatpush1.bf16.msra.mxu0 0
  %432 = vmatprep.subr.bf16.mxu0 0
  %433 = vmatpush1.bf16.msra.mxu0 0
  %434 = vmatprep.subr.bf16.mxu0 0
  %435 = vmatpush1.bf16.msra.mxu0 0
  %436 = vmatprep.subr.bf16.mxu0 0
  %437 = vmatpush1.bf16.msra.mxu0 0
  %438 = vmatprep.subr.bf16.mxu0 0
  %439 = vmatpush1.bf16.msra.mxu0 0
  %440 = vmatprep.subr.bf16.mxu0 0
  %441 = vmatpush1.bf16.msra.mxu0 0
  %442 = vmatprep.subr.bf16.mxu0 0
  %443 = vmatpush1.bf16.msra.mxu0 0
  %444 = vmatprep.subr.bf16.mxu0 0
  %445 = vmatpush1.bf16.msra.mxu0 0
  %446 = vmatprep.mubr.bf16.mxu0 0
  %447 = vmatmul.mubr.bf16.gmra.mrb[0].mxu0 %v406
  %v448 = vpop.f32.mrb[0].mxu0
  %v449 = vadd.f32 0.0, %v448
  %v450 = vpop.f32.mrb[0].mxu0
  %v451 = vadd.f32 0.0, %v450
  %v452 = vpop.f32.mrb[0].mxu0
  %v453 = vpop.f32.mrb[0].mxu0
  %454 = vdwg.mxu0
  %v455 = vmul.f32 %v449, %v147
  %v456 = vmul.f32 %v451, %v151
  %v457 = vsel %vm93, %v455, 0.0
  %vm458 = vcmask 584704
  %v459 = vsel %vm458, %v456, 0.0
  %v460 = vadd.f32 %v457, %v459
  %461 = vadd.xlane.f32.xlu0 %v460
  %v462 = vpop.xlane.xlu0 %461
  %v463 = vadd.f32 %v462, 0.0
  %v464 = vmul.f32 %v455, %v449
  %v465 = vmul.f32 %v456, %v451
  %v466 = vsel %vm93, %v464, 0.0
  %v467 = vsel %vm458, %v465, 0.0
  %v468 = vadd.f32 %v466, %v467
  %469 = vadd.xlane.f32.xlu0 %v468
  %v470 = vpop.xlane.xlu0 %469
  %v471 = vadd.f32 %v470, 0.0
  %472 = vrot.lane.b32.xlu0 %v344, 118
  %v473 = vpop.permute.xlu0 %472
  %474 = vrot.lane.b32.xlu0 %v345, 118
  %v475 = vpop.permute.xlu0 %474
  %v476 = vsel %vm339, %v473, %v475
  %477 = vrot.lane.b32.xlu0 %v317, 118
  %v478 = vpop.permute.xlu0 %477
  %479 = vrot.lane.b32.xlu0 %v318, 118
  %v480 = vpop.permute.xlu0 %479
  %v481 = vsel %vm339, %v478, %v480
  %v483 = vsel %vm93, %v317, %v312
  %v485 = vsel %vm93, %v318, %v313
  %v487 = vsel %vm93, %v324, %v476
  %v489 = vsel %vm93, %v322, %v475
  %v490 = vsel %vm93, %v340, %v351
  %v491 = vsel %vm93, %v338, %v349
  %v493 = vsel %vm93, %v481, %v361
  %v495 = vsel %vm93, %v480, %v360
  %504 = vrot.lane.b32.xlu0 %v483, 127
  %v505 = vpop.permute.xlu0 %504
  %506 = vrot.lane.b32.xlu0 %v485, 127
  %v507 = vpop.permute.xlu0 %506
  %508 = vrot.lane.b32.xlu0 %v487, 127
  %v509 = vpop.permute.xlu0 %508
  %510 = vrot.lane.b32.xlu0 %v489, 127
  %v511 = vpop.permute.xlu0 %510
  %512 = vrot.lane.b32.xlu0 %v490, 127
  %v513 = vpop.permute.xlu0 %512
  %514 = vrot.lane.b32.xlu0 %v491, 127
  %v515 = vpop.permute.xlu0 %514
  %516 = vrot.lane.b32.xlu0 %v493, 127
  %v517 = vpop.permute.xlu0 %516
  %518 = vrot.lane.b32.xlu0 %v495, 127
  %v519 = vpop.permute.xlu0 %518
  %520 = vrot.lane.b32.xlu0 %v366, 127
  %v521 = vpop.permute.xlu0 %520
  %522 = vrot.lane.b32.xlu0 %v365, 127
  %v523 = vpop.permute.xlu0 %522
  %v524 = vsel %vm323, %v505, %v507
  %v525 = vsel %vm323, %v509, %v511
  %v526 = vsel %vm323, %v513, %v515
  %v527 = vsel %vm323, %v517, %v519
  %v528 = vsel %vm323, %v521, %v523
  %v538 = vsel %vm93, %v528, 0
  %v541 = vsel %vm93, %v523, 0
  %543 = vmatprep.subr.bf16.mxu0 %v507
  %544 = vmatpush1.bf16.msra.mxu0 %v524
  %545 = vmatprep.subr.bf16.mxu0 %v511
  %546 = vmatpush1.bf16.msra.mxu0 %v525
  %547 = vmatprep.subr.bf16.mxu0 %v515
  %548 = vmatpush1.bf16.msra.mxu0 %v526
  %549 = vmatprep.subr.bf16.mxu0 %v519
  %550 = vmatpush1.bf16.msra.mxu0 %v527
  %551 = vmatprep.subr.bf16.mxu0 %v541
  %552 = vmatpush1.bf16.msra.mxu0 %v538
  %553 = vmatprep.subr.bf16.mxu0 0
  %554 = vmatpush1.bf16.msra.mxu0 0
  %555 = vmatprep.subr.bf16.mxu0 0
  %556 = vmatpush1.bf16.msra.mxu0 0
  %557 = vmatprep.subr.bf16.mxu0 0
  %558 = vmatpush1.bf16.msra.mxu0 0
  %559 = vmatprep.subr.bf16.mxu0 0
  %560 = vmatpush1.bf16.msra.mxu0 0
  %561 = vmatprep.subr.bf16.mxu0 0
  %562 = vmatpush1.bf16.msra.mxu0 0
  %563 = vmatprep.subr.bf16.mxu0 0
  %564 = vmatpush1.bf16.msra.mxu0 0
  %565 = vmatprep.subr.bf16.mxu0 0
  %566 = vmatpush1.bf16.msra.mxu0 0
  %567 = vmatprep.subr.bf16.mxu0 0
  %568 = vmatpush1.bf16.msra.mxu0 0
  %569 = vmatprep.subr.bf16.mxu0 0
  %570 = vmatpush1.bf16.msra.mxu0 0
  %571 = vmatprep.subr.bf16.mxu0 0
  %572 = vmatpush1.bf16.msra.mxu0 0
  %573 = vmatprep.subr.bf16.mxu0 0
  %574 = vmatpush1.bf16.msra.mxu0 0
  %575 = vmatprep.mubr.bf16.mxu0 0
  %576 = vmatmul.mubr.bf16.gmra.mrb[0].mxu0 %v406
  %v577 = vpop.f32.mrb[0].mxu0
  %v578 = vadd.f32 0.0, %v577
  %v579 = vpop.f32.mrb[0].mxu0
  %v580 = vadd.f32 0.0, %v579
  %v581 = vpop.f32.mrb[0].mxu0
  %v582 = vpop.f32.mrb[0].mxu0
  %583 = vdwg.mxu0
  %v584 = vmul.f32 %v578, %v147
  %v585 = vmul.f32 %v580, %v151
  %v586 = vsel %vm93, %v584, 0.0
  %v587 = vsel %vm458, %v585, 0.0
  %v588 = vadd.f32 %v586, %v587
  %589 = vadd.xlane.f32.xlu0 %v588
  %v590 = vpop.xlane.xlu0 %589
  %v591 = vadd.f32 %v463, %v590
  %v592 = vmul.f32 %v584, %v578
  %v593 = vmul.f32 %v585, %v580
  %v594 = vsel %vm93, %v592, 0.0
  %v595 = vsel %vm458, %v593, 0.0
  %v596 = vadd.f32 %v594, %v595
  %597 = vadd.xlane.f32.xlu0 %v596
  %v598 = vpop.xlane.xlu0 %597
  %v599 = vadd.f32 %v471, %v598
  %600 = vrot.lane.b32.xlu0 %v344, 127
  %v601 = vpop.permute.xlu0 %600
  %602 = vrot.lane.b32.xlu0 %v345, 127
  %v603 = vpop.permute.xlu0 %602
  %v604 = vsel %vm323, %v601, %v603
  %605 = vrot.lane.b32.xlu0 %v333, 127
  %v606 = vpop.permute.xlu0 %605
  %607 = vrot.lane.b32.xlu0 %v334, 127
  %v608 = vpop.permute.xlu0 %607
  %v609 = vsel %vm323, %v606, %v608
  %v612 = vsel %vm93, %v333, %v604
  %v615 = vsel %vm93, %v334, %v603
  %v617 = vsel %vm93, %v609, %v312
  %v619 = vsel %vm93, %v608, %v313
  %v620 = vsel %vm93, %v324, %v329
  %v621 = vsel %vm93, %v322, %v328
  %628 = vrot.lane.b32.xlu0 %v612, 118
  %v629 = vpop.permute.xlu0 %628
  %630 = vrot.lane.b32.xlu0 %v615, 118
  %v631 = vpop.permute.xlu0 %630
  %632 = vrot.lane.b32.xlu0 %v617, 118
  %v633 = vpop.permute.xlu0 %632
  %634 = vrot.lane.b32.xlu0 %v619, 118
  %v635 = vpop.permute.xlu0 %634
  %636 = vrot.lane.b32.xlu0 %v620, 118
  %v637 = vpop.permute.xlu0 %636
  %638 = vrot.lane.b32.xlu0 %v621, 118
  %v639 = vpop.permute.xlu0 %638
  %640 = vrot.lane.b32.xlu0 %v490, 118
  %v641 = vpop.permute.xlu0 %640
  %642 = vrot.lane.b32.xlu0 %v491, 118
  %v643 = vpop.permute.xlu0 %642
  %644 = vrot.lane.b32.xlu0 %v356, 118
  %v645 = vpop.permute.xlu0 %644
  %646 = vrot.lane.b32.xlu0 %v355, 118
  %v647 = vpop.permute.xlu0 %646
  %v648 = vsel %vm339, %v629, %v631
  %v649 = vsel %vm339, %v633, %v635
  %v650 = vsel %vm339, %v637, %v639
  %v651 = vsel %vm339, %v641, %v643
  %v652 = vsel %vm339, %v645, %v647
  %v662 = vsel %vm93, %v652, 0
  %v665 = vsel %vm93, %v647, 0
  %667 = vmatprep.subr.bf16.mxu0 %v631
  %668 = vmatpush1.bf16.msra.mxu0 %v648
  %669 = vmatprep.subr.bf16.mxu0 %v635
  %670 = vmatpush1.bf16.msra.mxu0 %v649
  %671 = vmatprep.subr.bf16.mxu0 %v639
  %672 = vmatpush1.bf16.msra.mxu0 %v650
  %673 = vmatprep.subr.bf16.mxu0 %v643
  %674 = vmatpush1.bf16.msra.mxu0 %v651
  %675 = vmatprep.subr.bf16.mxu0 %v665
  %676 = vmatpush1.bf16.msra.mxu0 %v662
  %677 = vmatprep.subr.bf16.mxu0 0
  %678 = vmatpush1.bf16.msra.mxu0 0
  %679 = vmatprep.subr.bf16.mxu0 0
  %680 = vmatpush1.bf16.msra.mxu0 0
  %681 = vmatprep.subr.bf16.mxu0 0
  %682 = vmatpush1.bf16.msra.mxu0 0
  %683 = vmatprep.subr.bf16.mxu0 0
  %684 = vmatpush1.bf16.msra.mxu0 0
  %685 = vmatprep.subr.bf16.mxu0 0
  %686 = vmatpush1.bf16.msra.mxu0 0
  %687 = vmatprep.subr.bf16.mxu0 0
  %688 = vmatpush1.bf16.msra.mxu0 0
  %689 = vmatprep.subr.bf16.mxu0 0
  %690 = vmatpush1.bf16.msra.mxu0 0
  %691 = vmatprep.subr.bf16.mxu0 0
  %692 = vmatpush1.bf16.msra.mxu0 0
  %693 = vmatprep.subr.bf16.mxu0 0
  %694 = vmatpush1.bf16.msra.mxu0 0
  %695 = vmatprep.subr.bf16.mxu0 0
  %696 = vmatpush1.bf16.msra.mxu0 0
  %697 = vmatprep.subr.bf16.mxu0 0
  %698 = vmatpush1.bf16.msra.mxu0 0
  %699 = vmatprep.mubr.bf16.mxu0 0
  %700 = vmatmul.mubr.bf16.gmra.mrb[0].mxu0 %v406
  %v701 = vpop.f32.mrb[0].mxu0
  %v702 = vadd.f32 0.0, %v701
  %v703 = vpop.f32.mrb[0].mxu0
  %v704 = vadd.f32 0.0, %v703
  %v705 = vpop.f32.mrb[0].mxu0
  %v706 = vpop.f32.mrb[0].mxu0
  %707 = vdwg.mxu0
  %v708 = vmul.f32 %v702, %v147
  %v709 = vmul.f32 %v704, %v151
  %v710 = vsel %vm93, %v708, 0.0
  %v711 = vsel %vm458, %v709, 0.0
  %v712 = vadd.f32 %v710, %v711
  %713 = vadd.xlane.f32.xlu0 %v712
  %v714 = vpop.xlane.xlu0 %713
  %v715 = vadd.f32 %v591, %v714
  %v716 = vmul.f32 %v708, %v702
  %v717 = vmul.f32 %v709, %v704
  %v718 = vsel %vm93, %v716, 0.0
  %v719 = vsel %vm458, %v717, 0.0
  %v720 = vadd.f32 %v718, %v719
  %721 = vadd.xlane.f32.xlu0 %v720
  %v722 = vpop.xlane.xlu0 %721
  %v723 = vadd.f32 %v599, %v722
  %v725 = vsel %vm93, %v344, %v333
  %v727 = vsel %vm93, %v345, %v334
  %v728 = vsel %vm93, %v604, %v317
  %v729 = vsel %vm93, %v603, %v318
  %v730 = vsel %vm93, %v476, %v340
  %v731 = vsel %vm93, %v475, %v338
  %740 = vrot.lane.b32.xlu0 %v725, 117
  %v741 = vpop.permute.xlu0 %740
  %742 = vrot.lane.b32.xlu0 %v727, 117
  %v743 = vpop.permute.xlu0 %742
  %744 = vrot.lane.b32.xlu0 %v728, 117
  %v745 = vpop.permute.xlu0 %744
  %746 = vrot.lane.b32.xlu0 %v729, 117
  %v747 = vpop.permute.xlu0 %746
  %748 = vrot.lane.b32.xlu0 %v374, 117
  %v749 = vpop.permute.xlu0 %748
  %750 = vrot.lane.b32.xlu0 %v378, 117
  %v751 = vpop.permute.xlu0 %750
  %752 = vrot.lane.b32.xlu0 %v730, 117
  %v753 = vpop.permute.xlu0 %752
  %754 = vrot.lane.b32.xlu0 %v731, 117
  %v755 = vpop.permute.xlu0 %754
  %756 = vrot.lane.b32.xlu0 %v351, 117
  %v757 = vpop.permute.xlu0 %756
  %758 = vrot.lane.b32.xlu0 %v349, 117
  %v759 = vpop.permute.xlu0 %758
  %v760 = vsel %vm350, %v741, %v743
  %v761 = vsel %vm350, %v745, %v747
  %v762 = vsel %vm350, %v749, %v751
  %v763 = vsel %vm350, %v753, %v755
  %v764 = vsel %vm350, %v757, %v759
  %v774 = vsel %vm93, %v764, 0
  %v777 = vsel %vm93, %v759, 0
  %779 = vmatprep.subr.bf16.mxu0 %v743
  %780 = vmatpush1.bf16.msra.mxu0 %v760
  %781 = vmatprep.subr.bf16.mxu0 %v747
  %782 = vmatpush1.bf16.msra.mxu0 %v761
  %783 = vmatprep.subr.bf16.mxu0 %v751
  %784 = vmatpush1.bf16.msra.mxu0 %v762
  %785 = vmatprep.subr.bf16.mxu0 %v755
  %786 = vmatpush1.bf16.msra.mxu0 %v763
  %787 = vmatprep.subr.bf16.mxu0 %v777
  %788 = vmatpush1.bf16.msra.mxu0 %v774
  %789 = vmatprep.subr.bf16.mxu0 0
  %790 = vmatpush1.bf16.msra.mxu0 0
  %791 = vmatprep.subr.bf16.mxu0 0
  %792 = vmatpush1.bf16.msra.mxu0 0
  %793 = vmatprep.subr.bf16.mxu0 0
  %794 = vmatpush1.bf16.msra.mxu0 0
  %795 = vmatprep.subr.bf16.mxu0 0
  %796 = vmatpush1.bf16.msra.mxu0 0
  %797 = vmatprep.subr.bf16.mxu0 0
  %798 = vmatpush1.bf16.msra.mxu0 0
  %799 = vmatprep.subr.bf16.mxu0 0
  %800 = vmatpush1.bf16.msra.mxu0 0
  %801 = vmatprep.subr.bf16.mxu0 0
  %802 = vmatpush1.bf16.msra.mxu0 0
  %803 = vmatprep.subr.bf16.mxu0 0
  %804 = vmatpush1.bf16.msra.mxu0 0
  %805 = vmatprep.subr.bf16.mxu0 0
  %806 = vmatpush1.bf16.msra.mxu0 0
  %807 = vmatprep.subr.bf16.mxu0 0
  %808 = vmatpush1.bf16.msra.mxu0 0
  %809 = vmatprep.subr.bf16.mxu0 0
  %810 = vmatpush1.bf16.msra.mxu0 0
  %811 = vmatprep.mubr.bf16.mxu0 0
  %812 = vmatmul.mubr.bf16.gmra.mrb[0].mxu0 %v406
  %v813 = vpop.f32.mrb[0].mxu0
  %v814 = vadd.f32 0.0, %v813
  %v815 = vpop.f32.mrb[0].mxu0
  %v816 = vadd.f32 0.0, %v815
  %v817 = vpop.f32.mrb[0].mxu0
  %v818 = vpop.f32.mrb[0].mxu0
  %819 = vdwg.mxu0
  %v820 = vmul.f32 %v814, %v147
  %v821 = vmul.f32 %v816, %v151
  %v822 = vsel %vm93, %v820, 0.0
  %v823 = vsel %vm458, %v821, 0.0
  %v824 = vadd.f32 %v822, %v823
  %825 = vadd.xlane.f32.xlu0 %v824
  %v826 = vpop.xlane.xlu0 %825
  %v827 = vadd.f32 %v715, %v826
  %v828 = vmul.f32 %v820, %v814
  %v829 = vmul.f32 %v821, %v816
  %v830 = vsel %vm93, %v828, 0.0
  %v831 = vsel %vm458, %v829, 0.0
  %v832 = vadd.f32 %v830, %v831
  %833 = vadd.xlane.f32.xlu0 %v832
  %v834 = vpop.xlane.xlu0 %833
  %v835 = vadd.f32 %v723, %v834
  %v836 = vmul.f32 %v827, 0.001953125
  %v837 = vmul.f32 %v835, 0.001953125
  %v838 = vmul.f32 %v836, %v836
  %v839 = vsub.f32 %v837, %v838
  %v840 = vadd.f32 %v839, 1e-05
  %v841 = vrsqrt.pop %v840
  %v842 = vmul.f32 %v841, %v42
  %v843 = vmul.f32 %v836, %v842
  %v844 = vsub.f32 %v43, %v843
  %846 = vset.pattern.permute.xlu0 0
  %847 = vperm.xlu0 %846, %v842
  %v848 = vpop.permute.xlu0 %847
  %v850 = vmul.f32 %v449, %v848
  %v851 = vmul.f32 %v451, %v848
  %853 = vset.pattern.permute.xlu0 0
  %854 = vperm.xlu0 %853, %v844
  %v855 = vpop.permute.xlu0 %854
  %v857 = vadd.f32 %v850, %v855
  %v858 = vadd.f32 %v851, %v855
  %v859 = vmax.f32 %v857, 0.0
  %v860 = vmax.f32 %v858, 0.0
  %v861 = vmul.f32 %v578, %v848
  %v862 = vmul.f32 %v580, %v848
  %v863 = vadd.f32 %v861, %v855
  %v864 = vadd.f32 %v862, %v855
  %v865 = vmax.f32 %v863, 0.0
  %v866 = vmax.f32 %v864, 0.0
  %v867 = vmul.f32 %v702, %v848
  %v868 = vmul.f32 %v704, %v848
  %v869 = vadd.f32 %v867, %v855
  %v870 = vadd.f32 %v868, %v855
  %v871 = vmax.f32 %v869, 0.0
  %v872 = vmax.f32 %v870, 0.0
  %v873 = vmul.f32 %v814, %v848
  %v874 = vmul.f32 %v816, %v848
  %v875 = vadd.f32 %v873, %v855
  %v876 = vadd.f32 %v874, %v855
  %v877 = vmax.f32 %v875, 0.0
  %v878 = vmax.f32 %v876, 0.0
  %v879 = vmul.f32 %v859, %v147
  %v880 = vmul.f32 %v860, %v151
  %v881 = vpack.c.bf16 %v879, %v879
  %v882 = vpack.c.bf16 %v880, %v880
  %v885 = vcombine.low %v881, %v882
  %v887 = vunpack.c.l.s4 1983009808
  %v888 = vunpack.c.0.s8 %v887
  %v889 = vlaneseq
  %v890 = vshrl.u32 %v889, 7
  %v891 = vsub.s32 %v888, %v890
  %v892 = vrot.slane %v885, %v891
  %893 = vrot.lane.b32.xlu0 %v892, 11
  %v894 = vpop.permute.xlu0 %893
  %v895 = vrot.slane %v894, 6
  %v896 = vsel %vm218, %v895, %v894
  %vm898 = vcmask 674818
  %vm899 = vmor %vm898, %vm227
  %900 = vst.msk [vmem:[#allocation3] sm:$0xf] %vm899, %v896
  %v901 = vmul.f32 %v865, %v147
  %v902 = vmul.f32 %v866, %v151
  %v903 = vpack.c.bf16 %v901, %v901
  %v904 = vpack.c.bf16 %v902, %v902
  %v907 = vcombine.low %v903, %v904
  %v909 = vunpack.c.l.s4 1983009808
  %v910 = vunpack.c.0.s8 %v909
  %v911 = vlaneseq
  %v912 = vshrl.u32 %v911, 7
  %v913 = vsub.s32 %v910, %v912
  %v914 = vrot.slane %v907, %v913
  %915 = vrot.lane.b32.xlu0 %v914, 11
  %v916 = vpop.permute.xlu0 %915
  %v917 = vrot.slane %v916, 6
  %v918 = vsel %vm218, %v917, %v916
  %s920 = scalar_lea.vmem [#allocation3], 4
  %921 = vst.msk [vmem:[%s920] sm:$0xf] %vm899, %v918
  %v922 = vmul.f32 %v871, %v147
  %v923 = vmul.f32 %v872, %v151
  %v924 = vpack.c.bf16 %v922, %v922
  %v925 = vpack.c.bf16 %v923, %v923
  %v928 = vcombine.low %v924, %v925
  %v930 = vunpack.c.l.s4 1983009808
  %v931 = vunpack.c.0.s8 %v930
  %v932 = vlaneseq
  %v933 = vshrl.u32 %v932, 7
  %v934 = vsub.s32 %v931, %v933
  %v935 = vrot.slane %v928, %v934
  %936 = vrot.lane.b32.xlu0 %v935, 11
  %v937 = vpop.permute.xlu0 %936
  %v938 = vrot.slane %v937, 6
  %v939 = vsel %vm218, %v938, %v937
  %s941 = scalar_lea.vmem [#allocation3], 8
  %942 = vst.msk [vmem:[%s941] sm:$0xf] %vm899, %v939
  %v943 = vmul.f32 %v877, %v147
  %v944 = vmul.f32 %v878, %v151
  %v945 = vpack.c.bf16 %v943, %v943
  %v946 = vpack.c.bf16 %v944, %v944
  %v949 = vcombine.low %v945, %v946
  %v951 = vunpack.c.l.s4 1983009808
  %v952 = vunpack.c.0.s8 %v951
  %v953 = vlaneseq
  %v954 = vshrl.u32 %v953, 7
  %v955 = vsub.s32 %v952, %v954
  %v956 = vrot.slane %v949, %v955
  %957 = vrot.lane.b32.xlu0 %v956, 11
  %v958 = vpop.permute.xlu0 %957
  %v959 = vrot.slane %v958, 6
  %v960 = vsel %vm218, %v959, %v958
  %s962 = scalar_lea.vmem [#allocation3], 12
  %963 = vst.msk [vmem:[%s962] sm:$0xf] %vm899, %v960
  %v964 = vld [vmem:[#allocation3] sm:$0xf]
  %v965 = vld [vmem:[%s920] sm:$0xf]
  %v966 = vld [vmem:[%s941] sm:$0xf]
  %v967 = vld [vmem:[%s962] sm:$0xf]
  %v968 = vld [vmem:[%s8] sm:$0x3]
  %v971 = vunpack.c.l.s4 1983009808
  %v972 = vunpack.c.0.s8 %v971
  %v973 = vlaneseq
  %v974 = vshrl.u32 %v973, 7
  %v975 = vsub.s32 %v972, %v974
  %v976 = vrot.slane %v967, %v975
  %v977 = vcombine.high %v976, %v976
  %v979 = vcombine.low %v966, %v966
  %v981 = vunpack.c.l.s4 1983009808
  %v982 = vunpack.c.0.s8 %v981
  %v983 = vlaneseq
  %v984 = vshrl.u32 %v983, 7
  %v985 = vsub.s32 %v982, %v984
  %v986 = vrot.slane %v979, %v985
  %v988 = vunpack.c.l.s4 1983009808
  %v989 = vunpack.c.0.s8 %v988
  %v990 = vlaneseq
  %v991 = vshrl.u32 %v990, 7
  %v992 = vsub.s32 %v989, %v991
  %v993 = vrot.slane %v966, %v992
  %v994 = vcombine.high %v986, %v986
  %995 = vrot.lane.b32.xlu0 %v986, 127
  %v996 = vpop.permute.xlu0 %995
  %997 = vrot.lane.b32.xlu0 %v994, 127
  %v998 = vpop.permute.xlu0 %997
  %v999 = vsel %vm323, %v996, %v998
  %v1000 = vcombine.low %v976, %v976
  %1001 = vrot.lane.b32.xlu0 %v1000, 127
  %v1002 = vpop.permute.xlu0 %1001
  %1003 = vrot.lane.b32.xlu0 %v976, 127
  %v1004 = vpop.permute.xlu0 %1003
  %v1005 = vsel %vm323, %v1002, %v1004
  %v1007 = vcombine.low %v965, %v965
  %v1009 = vunpack.c.l.s4 1983009808
  %v1010 = vunpack.c.0.s8 %v1009
  %v1011 = vlaneseq
  %v1012 = vshrl.u32 %v1011, 7
  %v1013 = vsub.s32 %v1010, %v1012
  %v1014 = vrot.slane %v1007, %v1013
  %v1016 = vunpack.c.l.s4 1983009808
  %v1017 = vunpack.c.0.s8 %v1016
  %v1018 = vlaneseq
  %v1019 = vshrl.u32 %v1018, 7
  %v1020 = vsub.s32 %v1017, %v1019
  %v1021 = vrot.slane %v965, %v1020
  %v1022 = vcombine.low %v1014, %v1014
  %1023 = vrot.lane.b32.xlu0 %v1022, 118
  %v1024 = vpop.permute.xlu0 %1023
  %1025 = vrot.lane.b32.xlu0 %v1014, 118
  %v1026 = vpop.permute.xlu0 %1025
  %v1027 = vsel %vm339, %v1024, %v1026
  %v1030 = vunpack.c.l.s4 1983009808
  %v1031 = vunpack.c.0.s8 %v1030
  %v1032 = vlaneseq
  %v1033 = vshrl.u32 %v1032, 7
  %v1034 = vsub.s32 %v1031, %v1033
  %v1035 = vrot.slane %v964, %v1034
  %v1036 = vcombine.high %v1035, %v1035
  %1037 = vrot.lane.b32.xlu0 %v1035, 117
  %v1038 = vpop.permute.xlu0 %1037
  %1039 = vrot.lane.b32.xlu0 %v1036, 117
  %v1040 = vpop.permute.xlu0 %1039
  %v1041 = vsel %vm350, %v1038, %v1040
  %v1042 = vcombine.high %v1014, %v1014
  %1043 = vrot.lane.b32.xlu0 %v1014, 117
  %v1044 = vpop.permute.xlu0 %1043
  %1045 = vrot.lane.b32.xlu0 %v1042, 117
  %v1046 = vpop.permute.xlu0 %1045
  %v1047 = vsel %vm350, %v1044, %v1046
  %1048 = vrot.lane.b32.xlu0 %v1000, 118
  %v1049 = vpop.permute.xlu0 %1048
  %1050 = vrot.lane.b32.xlu0 %v976, 118
  %v1051 = vpop.permute.xlu0 %1050
  %v1052 = vsel %vm339, %v1049, %v1051
  %v1053 = vcombine.low %v986, %v986
  %1054 = vrot.lane.b32.xlu0 %v1053, 117
  %v1055 = vpop.permute.xlu0 %1054
  %1056 = vrot.lane.b32.xlu0 %v986, 117
  %v1057 = vpop.permute.xlu0 %1056
  %v1058 = vsel %vm350, %v1055, %v1057
  %1059 = vrot.lane.b32.xlu0 %v976, 117
  %v1060 = vpop.permute.xlu0 %1059
  %1061 = vrot.lane.b32.xlu0 %v977, 117
  %v1062 = vpop.permute.xlu0 %1061
  %v1063 = vsel %vm350, %v1060, %v1062
  %vm1064 = vcmask 1041408
  %v1067 = vsel %vm1064, %v976, %v999
  %v1070 = vsel %vm1064, %v977, %v998
  %v1072 = vsel %vm93, %v1067, %v1005
  %v1074 = vsel %vm93, %v1070, %v1004
  %vm1075 = vcmask 1045504
  %v1077 = vsel %vm1075, %v1072, %v1027
  %v1080 = vsel %vm1075, %v1074, %v1026
  %v1084 = vsel %vm1064, %v1041, %v1047
  %v1087 = vsel %vm1064, %v1040, %v1046
  %v1089 = vsel %vm93, %v1084, %v1052
  %v1091 = vsel %vm93, %v1087, %v1051
  %v1093 = vsel %vm1075, %v1089, %v1058
  %v1096 = vsel %vm1075, %v1091, %v1057
  %vm1098 = vcmask 293888
  %v1100 = vsel %vm1098, %v968, 0
  %v1103 = vsel %vm1064, %v1063, 0
  %v1106 = vsel %vm1064, %v1062, 0
  %1108 = vmatprep.subr.bf16.mxu0 %v1080
  %1109 = vmatpush1.bf16.msra.mxu0 %v1077
  %1110 = vmatprep.subr.bf16.mxu0 %v1096
  %1111 = vmatpush1.bf16.msra.mxu0 %v1093
  %1112 = vmatprep.subr.bf16.mxu0 %v1106
  %1113 = vmatpush1.bf16.msra.mxu0 %v1103
  %1114 = vmatprep.subr.bf16.mxu0 0
  %1115 = vmatpush1.bf16.msra.mxu0 0
  %1116 = vmatprep.subr.bf16.mxu0 0
  %1117 = vmatpush1.bf16.msra.mxu0 0
  %1118 = vmatprep.subr.bf16.mxu0 0
  %1119 = vmatpush1.bf16.msra.mxu0 0
  %1120 = vmatprep.subr.bf16.mxu0 0
  %1121 = vmatpush1.bf16.msra.mxu0 0
  %1122 = vmatprep.subr.bf16.mxu0 0
  %1123 = vmatpush1.bf16.msra.mxu0 0
  %1124 = vmatprep.subr.bf16.mxu0 0
  %1125 = vmatpush1.bf16.msra.mxu0 0
  %1126 = vmatprep.subr.bf16.mxu0 0
  %1127 = vmatpush1.bf16.msra.mxu0 0
  %1128 = vmatprep.subr.bf16.mxu0 0
  %1129 = vmatpush1.bf16.msra.mxu0 0
  %1130 = vmatprep.subr.bf16.mxu0 0
  %1131 = vmatpush1.bf16.msra.mxu0 0
  %1132 = vmatprep.subr.bf16.mxu0 0
  %1133 = vmatpush1.bf16.msra.mxu0 0
  %1134 = vmatprep.subr.bf16.mxu0 0
  %1135 = vmatpush1.bf16.msra.mxu0 0
  %1136 = vmatprep.subr.bf16.mxu0 0
  %1137 = vmatpush1.bf16.msra.mxu0 0
  %1138 = vmatprep.subr.bf16.mxu0 0
  %1139 = vmatpush1.bf16.msra.mxu0 0
  %1140 = vmatprep.mubr.bf16.mxu0 0
  %1141 = vmatmul.mubr.bf16.gmra.mrb[0].mxu0 %v1100
  %v1142 = vpop.f32.mrb[0].mxu0
  %v1143 = vadd.f32 0.0, %v1142
  %v1144 = vpop.f32.mrb[0].mxu0
  %v1145 = vadd.f32 0.0, %v1144
  %v1146 = vpop.f32.mrb[0].mxu0
  %v1147 = vpop.f32.mrb[0].mxu0
  %1148 = vdwg.mxu0
  %v1149 = vmul.f32 %v1143, %v147
  %v1150 = vmul.f32 %v1145, %v151
  %v1151 = vsel %vm93, %v1149, 0.0
  %v1152 = vsel %vm458, %v1150, 0.0
  %v1153 = vadd.f32 %v1151, %v1152
  %1154 = vadd.xlane.f32.xlu0 %v1153
  %v1155 = vpop.xlane.xlu0 %1154
  %v1156 = vadd.f32 %v1155, 0.0
  %v1157 = vmul.f32 %v1149, %v1143
  %v1158 = vmul.f32 %v1150, %v1145
  %v1159 = vsel %vm93, %v1157, 0.0
  %v1160 = vsel %vm458, %v1158, 0.0
  %v1161 = vadd.f32 %v1159, %v1160
  %1162 = vadd.xlane.f32.xlu0 %v1161
  %v1163 = vpop.xlane.xlu0 %1162
  %v1164 = vadd.f32 %v1163, 0.0
  %v1165 = vcombine.high %v993, %v993
  %v1166 = vcombine.low %v967, %v967
  %v1168 = vunpack.c.l.s4 1983009808
  %v1169 = vunpack.c.0.s8 %v1168
  %v1170 = vlaneseq
  %v1171 = vshrl.u32 %v1170, 7
  %v1172 = vsub.s32 %v1169, %v1171
  %v1173 = vrot.slane %v1166, %v1172
  %v1174 = vcombine.high %v1173, %v1173
  %v1175 = vcombine.low %v993, %v993
  %1176 = vrot.lane.b32.xlu0 %v1175, 127
  %v1177 = vpop.permute.xlu0 %1176
  %1178 = vrot.lane.b32.xlu0 %v993, 127
  %v1179 = vpop.permute.xlu0 %1178
  %v1180 = vsel %vm323, %v1177, %v1179
  %v1181 = vcombine.low %v964, %v964
  %v1183 = vunpack.c.l.s4 1983009808
  %v1184 = vunpack.c.0.s8 %v1183
  %v1185 = vlaneseq
  %v1186 = vshrl.u32 %v1185, 7
  %v1187 = vsub.s32 %v1184, %v1186
  %v1188 = vrot.slane %v1181, %v1187
  %v1189 = vcombine.low %v1188, %v1188
  %1190 = vrot.lane.b32.xlu0 %v1189, 118
  %v1191 = vpop.permute.xlu0 %1190
  %1192 = vrot.lane.b32.xlu0 %v1188, 118
  %v1193 = vpop.permute.xlu0 %1192
  %v1194 = vsel %vm339, %v1191, %v1193
  %v1195 = vcombine.high %v1021, %v1021
  %1196 = vrot.lane.b32.xlu0 %v1021, 118
  %v1197 = vpop.permute.xlu0 %1196
  %1198 = vrot.lane.b32.xlu0 %v1195, 118
  %v1199 = vpop.permute.xlu0 %1198
  %v1200 = vsel %vm339, %v1197, %v1199
  %v1201 = vcombine.high %v1188, %v1188
  %1202 = vrot.lane.b32.xlu0 %v1188, 117
  %v1203 = vpop.permute.xlu0 %1202
  %1204 = vrot.lane.b32.xlu0 %v1201, 117
  %v1205 = vpop.permute.xlu0 %1204
  %v1206 = vsel %vm350, %v1203, %v1205
  %1207 = vrot.lane.b32.xlu0 %v1175, 118
  %v1208 = vpop.permute.xlu0 %1207
  %1209 = vrot.lane.b32.xlu0 %v993, 118
  %v1210 = vpop.permute.xlu0 %1209
  %v1211 = vsel %vm339, %v1208, %v1210
  %v1212 = vcombine.low %v1173, %v1173
  %1213 = vrot.lane.b32.xlu0 %v1212, 118
  %v1214 = vpop.permute.xlu0 %1213
  %1215 = vrot.lane.b32.xlu0 %v1173, 118
  %v1216 = vpop.permute.xlu0 %1215
  %v1217 = vsel %vm339, %v1214, %v1216
  %1218 = vrot.lane.b32.xlu0 %v993, 117
  %v1219 = vpop.permute.xlu0 %1218
  %1220 = vrot.lane.b32.xlu0 %v1165, 117
  %v1221 = vpop.permute.xlu0 %1220
  %v1222 = vsel %vm350, %v1219, %v1221
  %v1225 = vsel %vm1064, %v993, %v1173
  %v1228 = vsel %vm1064, %v1165, %v1174
  %v1230 = vsel %vm93, %v1225, %v1180
  %v1232 = vsel %vm93, %v1228, %v1179
  %v1234 = vsel %vm1075, %v1230, %v1194
  %v1236 = vsel %vm1075, %v1232, %v1193
  %v1239 = vsel %vm1064, %v1200, %v1206
  %v1242 = vsel %vm1064, %v1199, %v1205
  %v1244 = vsel %vm93, %v1239, %v1211
  %v1246 = vsel %vm93, %v1242, %v1210
  %v1248 = vsel %vm1075, %v1244, %v1217
  %v1250 = vsel %vm1075, %v1246, %v1216
  %1255 = vrot.lane.b32.xlu0 %v1234, 127
  %v1256 = vpop.permute.xlu0 %1255
  %1257 = vrot.lane.b32.xlu0 %v1236, 127
  %v1258 = vpop.permute.xlu0 %1257
  %1259 = vrot.lane.b32.xlu0 %v1248, 127
  %v1260 = vpop.permute.xlu0 %1259
  %1261 = vrot.lane.b32.xlu0 %v1250, 127
  %v1262 = vpop.permute.xlu0 %1261
  %1263 = vrot.lane.b32.xlu0 %v1222, 127
  %v1264 = vpop.permute.xlu0 %1263
  %1265 = vrot.lane.b32.xlu0 %v1221, 127
  %v1266 = vpop.permute.xlu0 %1265
  %v1267 = vsel %vm323, %v1256, %v1258
  %v1268 = vsel %vm323, %v1260, %v1262
  %v1269 = vsel %vm323, %v1264, %v1266
  %v1275 = vsel %vm1064, %v1269, 0
  %v1278 = vsel %vm1064, %v1266, 0
  %1280 = vmatprep.subr.bf16.mxu0 %v1258
  %1281 = vmatpush1.bf16.msra.mxu0 %v1267
  %1282 = vmatprep.subr.bf16.mxu0 %v1262
  %1283 = vmatpush1.bf16.msra.mxu0 %v1268
  %1284 = vmatprep.subr.bf16.mxu0 %v1278
  %1285 = vmatpush1.bf16.msra.mxu0 %v1275
  %1286 = vmatprep.subr.bf16.mxu0 0
  %1287 = vmatpush1.bf16.msra.mxu0 0
  %1288 = vmatprep.subr.bf16.mxu0 0
  %1289 = vmatpush1.bf16.msra.mxu0 0
  %1290 = vmatprep.subr.bf16.mxu0 0
  %1291 = vmatpush1.bf16.msra.mxu0 0
  %1292 = vmatprep.subr.bf16.mxu0 0
  %1293 = vmatpush1.bf16.msra.mxu0 0
  %1294 = vmatprep.subr.bf16.mxu0 0
  %1295 = vmatpush1.bf16.msra.mxu0 0
  %1296 = vmatprep.subr.bf16.mxu0 0
  %1297 = vmatpush1.bf16.msra.mxu0 0
  %1298 = vmatprep.subr.bf16.mxu0 0
  %1299 = vmatpush1.bf16.msra.mxu0 0
  %1300 = vmatprep.subr.bf16.mxu0 0
  %1301 = vmatpush1.bf16.msra.mxu0 0
  %1302 = vmatprep.subr.bf16.mxu0 0
  %1303 = vmatpush1.bf16.msra.mxu0 0
  %1304 = vmatprep.subr.bf16.mxu0 0
  %1305 = vmatpush1.bf16.msra.mxu0 0
  %1306 = vmatprep.subr.bf16.mxu0 0
  %1307 = vmatpush1.bf16.msra.mxu0 0
  %1308 = vmatprep.subr.bf16.mxu0 0
  %1309 = vmatpush1.bf16.msra.mxu0 0
  %1310 = vmatprep.subr.bf16.mxu0 0
  %1311 = vmatpush1.bf16.msra.mxu0 0
  %1312 = vmatprep.mubr.bf16.mxu0 0
  %1313 = vmatmul.mubr.bf16.gmra.mrb[0].mxu0 %v1100
  %v1314 = vpop.f32.mrb[0].mxu0
  %v1315 = vadd.f32 0.0, %v1314
  %v1316 = vpop.f32.mrb[0].mxu0
  %v1317 = vadd.f32 0.0, %v1316
  %v1318 = vpop.f32.mrb[0].mxu0
  %v1319 = vpop.f32.mrb[0].mxu0
  %1320 = vdwg.mxu0
  %v1321 = vmul.f32 %v1315, %v147
  %v1322 = vmul.f32 %v1317, %v151
  %v1323 = vsel %vm93, %v1321, 0.0
  %v1324 = vsel %vm458, %v1322, 0.0
  %v1325 = vadd.f32 %v1323, %v1324
  %1326 = vadd.xlane.f32.xlu0 %v1325
  %v1327 = vpop.xlane.xlu0 %1326
  %v1328 = vadd.f32 %v1156, %v1327
  %v1329 = vmul.f32 %v1321, %v1315
  %v1330 = vmul.f32 %v1322, %v1317
  %v1331 = vsel %vm93, %v1329, 0.0
  %v1332 = vsel %vm458, %v1330, 0.0
  %v1333 = vadd.f32 %v1331, %v1332
  %1334 = vadd.xlane.f32.xlu0 %v1333
  %v1335 = vpop.xlane.xlu0 %1334
  %v1336 = vadd.f32 %v1164, %v1335
  %1337 = vrot.lane.b32.xlu0 %v1188, 127
  %v1338 = vpop.permute.xlu0 %1337
  %1339 = vrot.lane.b32.xlu0 %v1201, 127
  %v1340 = vpop.permute.xlu0 %1339
  %v1341 = vsel %vm323, %v1338, %v1340
  %v1342 = vcombine.low %v1021, %v1021
  %1343 = vrot.lane.b32.xlu0 %v1342, 127
  %v1344 = vpop.permute.xlu0 %1343
  %1345 = vrot.lane.b32.xlu0 %v1021, 127
  %v1346 = vpop.permute.xlu0 %1345
  %v1347 = vsel %vm323, %v1344, %v1346
  %1348 = vrot.lane.b32.xlu0 %v1165, 127
  %v1349 = vpop.permute.xlu0 %1348
  %v1350 = vsel %vm323, %v1179, %v1349
  %1351 = vrot.lane.b32.xlu0 %v1173, 127
  %v1352 = vpop.permute.xlu0 %1351
  %1353 = vrot.lane.b32.xlu0 %v1174, 127
  %v1354 = vpop.permute.xlu0 %1353
  %v1355 = vsel %vm323, %v1352, %v1354
  %1356 = vrot.lane.b32.xlu0 %v1342, 118
  %v1357 = vpop.permute.xlu0 %1356
  %v1358 = vsel %vm339, %v1357, %v1197
  %1359 = vrot.lane.b32.xlu0 %v1189, 117
  %v1360 = vpop.permute.xlu0 %1359
  %v1361 = vsel %vm350, %v1360, %v1203
  %1362 = vrot.lane.b32.xlu0 %v1021, 117
  %v1363 = vpop.permute.xlu0 %1362
  %1364 = vrot.lane.b32.xlu0 %v1195, 117
  %v1365 = vpop.permute.xlu0 %1364
  %v1366 = vsel %vm350, %v1363, %v1365
  %v1369 = vsel %vm1064, %v1021, %v1341
  %v1372 = vsel %vm1064, %v1195, %v1340
  %v1374 = vsel %vm93, %v1369, %v1347
  %v1376 = vsel %vm93, %v1372, %v1346
  %v1378 = vsel %vm1075, %v1374, %v1212
  %v1379 = vsel %vm1075, %v1376, %v1173
  %v1382 = vsel %vm1064, %v1350, %v1355
  %v1385 = vsel %vm1064, %v1349, %v1354
  %v1387 = vsel %vm93, %v1382, %v1358
  %v1389 = vsel %vm93, %v1385, %v1197
  %v1391 = vsel %vm1075, %v1387, %v1361
  %v1393 = vsel %vm1075, %v1389, %v1203
  %1398 = vrot.lane.b32.xlu0 %v1378, 118
  %v1399 = vpop.permute.xlu0 %1398
  %1400 = vrot.lane.b32.xlu0 %v1379, 118
  %v1401 = vpop.permute.xlu0 %1400
  %1402 = vrot.lane.b32.xlu0 %v1391, 118
  %v1403 = vpop.permute.xlu0 %1402
  %1404 = vrot.lane.b32.xlu0 %v1393, 118
  %v1405 = vpop.permute.xlu0 %1404
  %1406 = vrot.lane.b32.xlu0 %v1366, 118
  %v1407 = vpop.permute.xlu0 %1406
  %1408 = vrot.lane.b32.xlu0 %v1365, 118
  %v1409 = vpop.permute.xlu0 %1408
  %v1410 = vsel %vm339, %v1399, %v1401
  %v1411 = vsel %vm339, %v1403, %v1405
  %v1412 = vsel %vm339, %v1407, %v1409
  %v1418 = vsel %vm1064, %v1412, 0
  %v1421 = vsel %vm1064, %v1409, 0
  %1423 = vmatprep.subr.bf16.mxu0 %v1401
  %1424 = vmatpush1.bf16.msra.mxu0 %v1410
  %1425 = vmatprep.subr.bf16.mxu0 %v1405
  %1426 = vmatpush1.bf16.msra.mxu0 %v1411
  %1427 = vmatprep.subr.bf16.mxu0 %v1421
  %1428 = vmatpush1.bf16.msra.mxu0 %v1418
  %1429 = vmatprep.subr.bf16.mxu0 0
  %1430 = vmatpush1.bf16.msra.mxu0 0
  %1431 = vmatprep.subr.bf16.mxu0 0
  %1432 = vmatpush1.bf16.msra.mxu0 0
  %1433 = vmatprep.subr.bf16.mxu0 0
  %1434 = vmatpush1.bf16.msra.mxu0 0
  %1435 = vmatprep.subr.bf16.mxu0 0
  %1436 = vmatpush1.bf16.msra.mxu0 0
  %1437 = vmatprep.subr.bf16.mxu0 0
  %1438 = vmatpush1.bf16.msra.mxu0 0
  %1439 = vmatprep.subr.bf16.mxu0 0
  %1440 = vmatpush1.bf16.msra.mxu0 0
  %1441 = vmatprep.subr.bf16.mxu0 0
  %1442 = vmatpush1.bf16.msra.mxu0 0
  %1443 = vmatprep.subr.bf16.mxu0 0
  %1444 = vmatpush1.bf16.msra.mxu0 0
  %1445 = vmatprep.subr.bf16.mxu0 0
  %1446 = vmatpush1.bf16.msra.mxu0 0
  %1447 = vmatprep.subr.bf16.mxu0 0
  %1448 = vmatpush1.bf16.msra.mxu0 0
  %1449 = vmatprep.subr.bf16.mxu0 0
  %1450 = vmatpush1.bf16.msra.mxu0 0
  %1451 = vmatprep.subr.bf16.mxu0 0
  %1452 = vmatpush1.bf16.msra.mxu0 0
  %1453 = vmatprep.subr.bf16.mxu0 0
  %1454 = vmatpush1.bf16.msra.mxu0 0
  %1455 = vmatprep.mubr.bf16.mxu0 0
  %1456 = vmatmul.mubr.bf16.gmra.mrb[0].mxu0 %v1100
  %v1457 = vpop.f32.mrb[0].mxu0
  %v1458 = vadd.f32 0.0, %v1457
  %v1459 = vpop.f32.mrb[0].mxu0
  %v1460 = vadd.f32 0.0, %v1459
  %v1461 = vpop.f32.mrb[0].mxu0
  %v1462 = vpop.f32.mrb[0].mxu0
  %1463 = vdwg.mxu0
  %v1464 = vmul.f32 %v1458, %v147
  %v1465 = vmul.f32 %v1460, %v151
  %v1466 = vsel %vm93, %v1464, 0.0
  %v1467 = vsel %vm458, %v1465, 0.0
  %v1468 = vadd.f32 %v1466, %v1467
  %1469 = vadd.xlane.f32.xlu0 %v1468
  %v1470 = vpop.xlane.xlu0 %1469
  %v1471 = vadd.f32 %v1328, %v1470
  %v1472 = vmul.f32 %v1464, %v1458
  %v1473 = vmul.f32 %v1465, %v1460
  %v1474 = vsel %vm93, %v1472, 0.0
  %v1475 = vsel %vm458, %v1473, 0.0
  %v1476 = vadd.f32 %v1474, %v1475
  %1477 = vadd.xlane.f32.xlu0 %v1476
  %v1478 = vpop.xlane.xlu0 %1477
  %v1479 = vadd.f32 %v1336, %v1478
  %v1480 = vcombine.low %v1035, %v1035
  %1481 = vrot.lane.b32.xlu0 %v1480, 127
  %v1482 = vpop.permute.xlu0 %1481
  %1483 = vrot.lane.b32.xlu0 %v1035, 127
  %v1484 = vpop.permute.xlu0 %1483
  %v1485 = vsel %vm323, %v1482, %v1484
  %1486 = vrot.lane.b32.xlu0 %v1480, 118
  %v1487 = vpop.permute.xlu0 %1486
  %1488 = vrot.lane.b32.xlu0 %v1035, 118
  %v1489 = vpop.permute.xlu0 %1488
  %v1490 = vsel %vm339, %v1487, %v1489
  %v1493 = vsel %vm1064, %v1035, %v1014
  %v1496 = vsel %vm1064, %v1036, %v1042
  %v1498 = vsel %vm93, %v1493, %v1485
  %v1500 = vsel %vm93, %v1496, %v1484
  %v1502 = vsel %vm1075, %v1498, %v1053
  %v1504 = vsel %vm1075, %v1500, %v986
  %v1506 = vsel %vm93, %v1067, %v1490
  %v1508 = vsel %vm93, %v1070, %v1489
  %v1509 = vsel %vm1075, %v1506, %v1027
  %v1510 = vsel %vm1075, %v1508, %v1026
  %1515 = vrot.lane.b32.xlu0 %v1502, 117
  %v1516 = vpop.permute.xlu0 %1515
  %1517 = vrot.lane.b32.xlu0 %v1504, 117
  %v1518 = vpop.permute.xlu0 %1517
  %1519 = vrot.lane.b32.xlu0 %v1509, 117
  %v1520 = vpop.permute.xlu0 %1519
  %1521 = vrot.lane.b32.xlu0 %v1510, 117
  %v1522 = vpop.permute.xlu0 %1521
  %1523 = vrot.lane.b32.xlu0 %v1041, 117
  %v1524 = vpop.permute.xlu0 %1523
  %1525 = vrot.lane.b32.xlu0 %v1040, 117
  %v1526 = vpop.permute.xlu0 %1525
  %v1527 = vsel %vm350, %v1516, %v1518
  %v1528 = vsel %vm350, %v1520, %v1522
  %v1529 = vsel %vm350, %v1524, %v1526
  %v1535 = vsel %vm1064, %v1529, 0
  %v1538 = vsel %vm1064, %v1526, 0
  %1540 = vmatprep.subr.bf16.mxu0 %v1518
  %1541 = vmatpush1.bf16.msra.mxu0 %v1527
  %1542 = vmatprep.subr.bf16.mxu0 %v1522
  %1543 = vmatpush1.bf16.msra.mxu0 %v1528
  %1544 = vmatprep.subr.bf16.mxu0 %v1538
  %1545 = vmatpush1.bf16.msra.mxu0 %v1535
  %1546 = vmatprep.subr.bf16.mxu0 0
  %1547 = vmatpush1.bf16.msra.mxu0 0
  %1548 = vmatprep.subr.bf16.mxu0 0
  %1549 = vmatpush1.bf16.msra.mxu0 0
  %1550 = vmatprep.subr.bf16.mxu0 0
  %1551 = vmatpush1.bf16.msra.mxu0 0
  %1552 = vmatprep.subr.bf16.mxu0 0
  %1553 = vmatpush1.bf16.msra.mxu0 0
  %1554 = vmatprep.subr.bf16.mxu0 0
  %1555 = vmatpush1.bf16.msra.mxu0 0
  %1556 = vmatprep.subr.bf16.mxu0 0
  %1557 = vmatpush1.bf16.msra.mxu0 0
  %1558 = vmatprep.subr.bf16.mxu0 0
  %1559 = vmatpush1.bf16.msra.mxu0 0
  %1560 = vmatprep.subr.bf16.mxu0 0
  %1561 = vmatpush1.bf16.msra.mxu0 0
  %1562 = vmatprep.subr.bf16.mxu0 0
  %1563 = vmatpush1.bf16.msra.mxu0 0
  %1564 = vmatprep.subr.bf16.mxu0 0
  %1565 = vmatpush1.bf16.msra.mxu0 0
  %1566 = vmatprep.subr.bf16.mxu0 0
  %1567 = vmatpush1.bf16.msra.mxu0 0
  %1568 = vmatprep.subr.bf16.mxu0 0
  %1569 = vmatpush1.bf16.msra.mxu0 0
  %1570 = vmatprep.subr.bf16.mxu0 0
  %1571 = vmatpush1.bf16.msra.mxu0 0
  %1572 = vmatprep.mubr.bf16.mxu0 0
  %1573 = vmatmul.mubr.bf16.gmra.mrb[0].mxu0 %v1100
  %v1574 = vpop.f32.mrb[0].mxu0
  %v1575 = vadd.f32 0.0, %v1574
  %v1576 = vpop.f32.mrb[0].mxu0
  %v1577 = vadd.f32 0.0, %v1576
  %v1578 = vpop.f32.mrb[0].mxu0
  %v1579 = vpop.f32.mrb[0].mxu0
  %1580 = vdwg.mxu0
  %v1581 = vmul.f32 %v1575, %v147
  %v1582 = vmul.f32 %v1577, %v151
  %v1583 = vsel %vm93, %v1581, 0.0
  %v1584 = vsel %vm458, %v1582, 0.0
  %v1585 = vadd.f32 %v1583, %v1584
  %1586 = vadd.xlane.f32.xlu0 %v1585
  %v1587 = vpop.xlane.xlu0 %1586
  %v1588 = vadd.f32 %v1471, %v1587
  %v1589 = vmul.f32 %v1581, %v1575
  %v1590 = vmul.f32 %v1582, %v1577
  %v1591 = vsel %vm93, %v1589, 0.0
  %v1592 = vsel %vm458, %v1590, 0.0
  %v1593 = vadd.f32 %v1591, %v1592
  %1594 = vadd.xlane.f32.xlu0 %v1593
  %v1595 = vpop.xlane.xlu0 %1594
  %v1596 = vadd.f32 %v1479, %v1595
  %v1597 = vmul.f32 %v1588, 0.001953125
  %v1598 = vmul.f32 %v1596, 0.001953125
  %v1599 = vmul.f32 %v1597, %v1597
  %v1600 = vsub.f32 %v1598, %v1599
  %v1601 = vadd.f32 %v1600, 1e-05
  %v1602 = vrsqrt.pop %v1601
  %v1603 = vmul.f32 %v1602, %v44
  %v1604 = vmul.f32 %v1597, %v1603
  %v1605 = vsub.f32 %v45, %v1604
  %1607 = vset.pattern.permute.xlu0 0
  %1608 = vperm.xlu0 %1607, %v1603
  %v1609 = vpop.permute.xlu0 %1608
  %v1611 = vmul.f32 %v1143, %v1609
  %v1612 = vmul.f32 %v1145, %v1609
  %1614 = vset.pattern.permute.xlu0 0
  %1615 = vperm.xlu0 %1614, %v1605
  %v1616 = vpop.permute.xlu0 %1615
  %v1618 = vadd.f32 %v1611, %v1616
  %v1619 = vadd.f32 %v1612, %v1616
  %v1620 = vmax.f32 %v1618, 0.0
  %v1621 = vmax.f32 %v1619, 0.0
  %v1622 = vmul.f32 %v1315, %v1609
  %v1623 = vmul.f32 %v1317, %v1609
  %v1624 = vadd.f32 %v1622, %v1616
  %v1625 = vadd.f32 %v1623, %v1616
  %v1626 = vmax.f32 %v1624, 0.0
  %v1627 = vmax.f32 %v1625, 0.0
  %v1628 = vmul.f32 %v1458, %v1609
  %v1629 = vmul.f32 %v1460, %v1609
  %v1630 = vadd.f32 %v1628, %v1616
  %v1631 = vadd.f32 %v1629, %v1616
  %v1632 = vmax.f32 %v1630, 0.0
  %v1633 = vmax.f32 %v1631, 0.0
  %v1634 = vmul.f32 %v1575, %v1609
  %v1635 = vmul.f32 %v1577, %v1609
  %v1636 = vadd.f32 %v1634, %v1616
  %v1637 = vadd.f32 %v1635, %v1616
  %v1638 = vmax.f32 %v1636, 0.0
  %v1639 = vmax.f32 %v1637, 0.0
  %v1642 = vcombine.low %v1620, %v1621
  %vm1644 = vcmask 588804
  %vm1645 = vmor %vm1644, %vm93
  %1646 = vst.msk [vmem:[%s11] sm:$0xff] %vm1645, %v1642
  %v1649 = vcombine.low %v1626, %v1627
  %s1651 = scalar_lea.vmem %s11, 8
  %1652 = vst.msk [vmem:[%s1651] sm:$0xff] %vm1645, %v1649
  %v1655 = vcombine.low %v1632, %v1633
  %s1657 = scalar_lea.vmem %s11, 16
  %1658 = vst.msk [vmem:[%s1657] sm:$0xff] %vm1645, %v1655
  %v1661 = vcombine.low %v1638, %v1639
  %s1663 = scalar_lea.vmem %s11, 24
  %1664 = vst.msk [vmem:[%s1663] sm:$0xff] %vm1645, %v1661
  // Predicated region
  $region46: #{unet_decoder_block_forward.1} parent=0 // pred_check
    _
  $region47: #{unet_decoder_block_forward.1} parent=0 // pred_check_branch
    %1666 = sbr.rel (0) target = $region49
  $region48: #{unet_decoder_block_forward.1} parent=0 // pred_region
    _
  $region49: #{unet_decoder_block_forward.1} parent=0 // pred_fallthru
    _
  // Predicated region
  $region50: #{unet_decoder_block_forward.1} parent=0 // pred_check
    _
  $region51: #{unet_decoder_block_forward.1} parent=0 // pred_check_branch
    %1668 = sbr.rel (0) target = $region53
  $region52: #{unet_decoder_block_forward.1} parent=0 // pred_region
    _
  $region53: #{unet_decoder_block_forward.1} parent=0 // pred_fallthru
    _

</llo_original>
